<compile_context>
chip_gen: v6e
topology: v6e:2x2x1
jax: 0.10.0
libtpu: 0.0.40
codegen_flags: <defaults>
</compile_context>

<pallas_src>
import math
import functools

import jax
import jax.numpy as jnp
import numpy as np
from jax.experimental import pallas as pl
from jax.experimental.pallas import tpu as pltpu

SQRT_HALF = math.sqrt(0.5)


# ----------------------------------------------------------------------------
# Fused kernel: grid = (batch, flow).  One grid step == one flow applied to one
# batch element; z / mu_tot / logs_tot live in VMEM scratch across the flow axis.
# All activations are (C, T) with T on lanes.
# ----------------------------------------------------------------------------
def _student_kernel(z_ref, c_ref,
                    fw_ref, fb_ref,
                    wcat_ref, bfg_ref, wrs_ref, brs_ref,
                    f1w_ref, f1b_ref, f2w_ref, f2b_ref,
                    z_out_ref, mut_out_ref, lgt_out_ref,
                    z_sc, mut_sc, lgt_sc,
                    *, dilations):
    f32 = jnp.float32
    flow = pl.program_id(1)
    n_flows = pl.num_programs(1)

    # ---- (re)initialize the per-batch carries at the first flow -------------
    @pl.when(flow == 0)
    def _():
        z_sc[...] = z_ref[0].astype(f32)
        mut_sc[...] = jnp.zeros_like(mut_sc)
        lgt_sc[...] = jnp.zeros_like(lgt_sc)

    z = z_sc[...]                               # (1, T)
    c = c_ref[0].astype(f32)                    # (Cc, T)
    T = z.shape[1]
    Cc = c.shape[0]

    lane = jax.lax.broadcasted_iota(jnp.int32, (1, T), 1)
    mask_cache = {}                             # one (1,T) mask per distinct shift

    def cshift(x, s):
        # causal time shift: out[:, t] = x[:, t - s], zero for t < s
        if s == 0:
            return x
        if s not in mask_cache:
            mask_cache[s] = lane >= s
        return jnp.where(mask_cache[s], pltpu.roll(x, shift=s, axis=1), 0.0)

    # ---- front conv: Conv1d(1 -> R, K=FK, causal) + ReLU ---------------------
    fw = fw_ref[0]                              # (FK, R, 1)
    FK, R = fw.shape[0], fw.shape[1]
    acc = jnp.zeros((R, T), f32)
    for k in range(FK):
        acc = acc + fw[k] * cshift(z, FK - 1 - k)       # (R,1)*(1,T) -> (R,T)
    h = jnp.maximum(acc + fb_ref[0], 0.0)               # (R, T)

    # ---- residual blocks: ONE stacked matmul per block (taps + conditioning) -
    twoG = wcat_ref.shape[2]
    G = twoG // 2
    K = (wcat_ref.shape[3] - Cc) // R
    S = wrs_ref.shape[2] - R

    skip = jnp.zeros((S, T), f32)
    for i, d in enumerate(dilations):
        # stacked operand [c ; h shifted by (K-1)d ; ... ; h] : (Cc + K*R, T)
        x = jnp.concatenate(
            [c] + [cshift(h, (K - 1 - k) * d) for k in range(K)], axis=0)
        pre = jnp.dot(wcat_ref[0, i], x, preferred_element_type=f32) + bfg_ref[0, i]
        gated = jnp.tanh(pre[:G]) * jax.nn.sigmoid(pre[G:])            # (G, T)
        # res|skip 1x1 convs fused into one (R+S, G) matmul
        rs = jnp.dot(wrs_ref[0, i], gated, preferred_element_type=f32) + brs_ref[0, i]
        h = (h + rs[:R]) * SQRT_HALF
        skip = skip + rs[R:]

    # ---- final convs: ReLU -> 1x1(S->S) -> ReLU -> 1x1(S->2, mu|logs stacked)
    sk = jnp.maximum(skip, 0.0)
    f1 = jnp.maximum(
        jnp.dot(f1w_ref[0], sk, preferred_element_type=f32) + f1b_ref[0], 0.0)
    ml = jnp.dot(f2w_ref[0], f1, preferred_element_type=f32) + f2b_ref[0]   # (2, T)
    mu, logs = ml[0:1], ml[1:2]

    # ---- IAF elementwise update (exp computed once, carries stay in VMEM) ----
    # carries are full length T; slot T-1 is unused and sliced off by the wrapper
    # (the pointwise recursion never mixes slots).
    e = jnp.exp(logs)
    mut_sc[...] = mut_sc[...] * e + mu
    lgt_sc[...] = lgt_sc[...] + logs
    # z_new[t] = z[t] * exp(logs[t-1]) + mu[t-1]  (t >= 1);  z_new[0] = 0
    # (cshift zero-fills slot 0 of both operands, so no extra mask is needed)
    z_sc[...] = z * cshift(e, 1) + cshift(mu, 1)

    # ---- write the final carries out after the last flow ---------------------
    @pl.when(flow == n_flows - 1)
    def _():
        z_out_ref[0] = z_sc[...].astype(z_out_ref.dtype)
        mut_out_ref[0] = mut_sc[...].astype(mut_out_ref.dtype)
        lgt_out_ref[0] = lgt_sc[...].astype(lgt_out_ref.dtype)


# ----------------------------------------------------------------------------
# Wrapper: single pallas_call for the whole student.  Tensors are (B, C, T).
# ----------------------------------------------------------------------------
def wavenet_student(z, c, sp):
    """z: (B,1,T), c: (B,Cc,T) PyTorch layout.  Returns (z, mu_tot, logs_tot)."""
    B, _, T = z.shape
    Cc = c.shape[1]
    NF = sp['front_w'].shape[0]
    NB = len(sp['dilations'])
    R = sp['front_w'].shape[2]
    twoG = sp['wcat'].shape[2]
    G = twoG // 2
    K = (sp['wcat'].shape[3] - Cc) // R
    S = sp['wrs'].shape[2] - R
    FK = sp['front_w'].shape[1]

    kernel = functools.partial(_student_kernel, dilations=sp['dilations'])

    weights = (sp['front_w'], sp['front_b'],
               sp['wcat'], sp['bfg'], sp['wrs'], sp['brs'],
               sp['f1_w'], sp['f1_b'], sp['f2_w'], sp['f2_b'])

    def w_spec(w):
        nzeros = w.ndim - 1

        def imap(b, f):
            return (f,) + (0,) * nzeros
        return pl.BlockSpec((1,) + tuple(w.shape[1:]), imap)

    def a_spec(cdim):
        return pl.BlockSpec((1, cdim, T), lambda b, f: (b, 0, 0))

    out_shape = tuple(jax.ShapeDtypeStruct((B, 1, T), jnp.float32) for _ in range(3))

    # --- VMEM budget: double-buffered io/weight blocks + scratch + live temps ---
    def nbytes(x):
        return int(np.prod(x.shape)) * x.dtype.itemsize

    w_block_bytes = sum(nbytes(w) // w.shape[0] for w in weights)
    io_block_bytes = (1 + Cc + 3) * T * 4
    scratch_bytes = 3 * T * 4
    act_bytes = (Cc + K * R + twoG + 2 * R + 2 * S + 8) * T * 4
    vmem_limit = int(2 * (w_block_bytes + io_block_bytes)
                     + scratch_bytes + 2 * act_bytes) + (4 << 20)
    vmem_limit = int(min(max(vmem_limit, 8 << 20), 64 << 20))

    # --- advisory cost estimate for XLA scheduling around the call --------------
    flops_per_bf = (2 * R * FK * T
                    + NB * (2 * twoG * (Cc + K * R) * T + 2 * (R + S) * G * T)
                    + 2 * S * S * T + 2 * 2 * S * T
                    + 8 * T)
    transc_per_bf = NB * 2 * G * T + T
    cost = pl.CostEstimate(
        flops=int(B * NF * flops_per_bf),
        transcendentals=int(B * NF * transc_per_bf),
        bytes_accessed=int(nbytes(z) + nbytes(c)
                           + B * sum(nbytes(w) for w in weights)
                           + 3 * B * T * 4))

    zo, muto, lgto = pl.pallas_call(
        kernel,
        out_shape=out_shape,
        grid=(B, NF),
        in_specs=[a_spec(1), a_spec(Cc)] + [w_spec(w) for w in weights],
        out_specs=tuple(a_spec(1) for _ in range(3)),
        scratch_shapes=[pltpu.VMEM((1, T), jnp.float32),
                        pltpu.VMEM((1, T), jnp.float32),
                        pltpu.VMEM((1, T), jnp.float32)],
        compiler_params=pltpu.CompilerParams(
            dimension_semantics=("parallel", "arbitrary"),
            vmem_limit_bytes=vmem_limit),
        cost_estimate=cost,
    )(z, c, *weights)

    return zo, muto[:, :, :T - 1], lgto[:, :, :T - 1]


# ----------------------------------------------------------------------------
# Synthetic parameters (weight_norm folded into effective weights).
# Per-flow (unstacked) params are used by the pure-JAX reference; the kernel
# uses the stacked form built by stack_student_params.
# ----------------------------------------------------------------------------
def init_flow_params(key, cfg):
    R, G, S, Cc = cfg['residual'], cfg['gate'], cfg['skip'], cfg['cin']
    K, FK = cfg['kernel'], cfg['front_kernel']
    NB = cfg['num_blocks'] * cfg['num_layers']
    dilations = tuple(2 ** (n % cfg['num_layers']) for n in range(NB))
    ks = jax.random.split(key, 13)
    w = lambda k, shape, s: (s * jax.random.normal(k, shape)).astype(jnp.float32)
    return {
        'dilations': dilations,
        'front_w': w(ks[0], (FK, R, 1), 0.3),
        'front_b': w(ks[1], (R, 1), 0.02),
        'wfg':     w(ks[2], (NB, K, 2 * G, R), 0.15),
        'bfg':     w(ks[3], (NB, 2 * G, 1), 0.02),
        'wfgc':    w(ks[4], (NB, 2 * G, Cc), 0.15),
        'wrs':     w(ks[5], (NB, R + S, G), 0.15),
        'brs':     w(ks[6], (NB, R + S, 1), 0.02),
        'f1_w':    w(ks[7], (S, S), 0.15),
        'f1_b':    w(ks[8], (S, 1), 0.02),
        'f2_w_mu':   w(ks[9], (1, S), 0.1),
        'f2_b_mu':   w(ks[10], (1, 1), 0.01),
        'f2_w_logs': w(ks[11], (1, S), 0.1),
        'f2_b_logs': w(ks[12], (1, 1), 0.01),
    }


def stack_student_params(flows):
    """Stack per-flow params on a leading flow axis + build the fused weights."""
    dil = flows[0]['dilations']
    for p in flows:
        assert p['dilations'] == dil, "all flows must share the dilation schedule"

    def st(name):
        return jnp.stack([p[name] for p in flows], axis=0)

    # per block: [ wfgc | wfg tap 0 | ... | wfg tap K-1 ]  ->  (2G, Cc + K*R)
    wcat = jnp.stack(
        [jnp.concatenate([p['wfgc']]
                         + [p['wfg'][:, k] for k in range(p['wfg'].shape[1])],
                         axis=-1)
         for p in flows], axis=0)
    # final 1x1 convs: mu row 0, logs row 1
    f2_w = jnp.stack([jnp.concatenate([p['f2_w_mu'], p['f2_w_logs']], axis=0)
                      for p in flows], axis=0)
    f2_b = jnp.stack([jnp.concatenate([p['f2_b_mu'], p['f2_b_logs']], axis=0)
                      for p in flows], axis=0)
    return {
        'dilations': dil,
        'front_w': st('front_w'),    # (NF, FK, R, 1)
        'front_b': st('front_b'),    # (NF, R, 1)
        'wcat': wcat,                # (NF, NB, 2G, Cc + K*R)
        'bfg': st('bfg'),            # (NF, NB, 2G, 1)
        'wrs': st('wrs'),            # (NF, NB, R+S, G)
        'brs': st('brs'),            # (NF, NB, R+S, 1)
        'f1_w': st('f1_w'),          # (NF, S, S)
        'f1_b': st('f1_b'),          # (NF, S, 1)
        'f2_w': f2_w,                # (NF, 2, S)
        'f2_b': f2_b,                # (NF, 2, 1)
    }


# ----------------------------------------------------------------------------
# Pure-JAX reference (same parameters, same math, no Pallas) for verification.
# ----------------------------------------------------------------------------
def _ref_shift(x, s):
    if s == 0:
        return x
    return jnp.pad(x, ((0, 0), (0, 0), (s, 0)))[:, :, :x.shape[-1]]


def _ref_flow(z, c, p):
    hp = functools.partial(jnp.einsum, precision=jax.lax.Precision.HIGHEST)
    fw, fb = p['front_w'], p['front_b']
    FK = fw.shape[0]
    acc = 0.0
    for k in range(FK):
        acc = acc + hp('ri,bit->brt', fw[k], _ref_shift(z, FK - 1 - k))
    h = jax.nn.relu(acc + fb)

    wfg, bfg, wfgc = p['wfg'], p['bfg'], p['wfgc']
    wrs, brs = p['wrs'], p['brs']
    K = wfg.shape[1]
    G = wfg.shape[2] // 2
    R = wfg.shape[3]
    skip = 0.0
    for i, d in enumerate(p['dilations']):
        pre = hp('oc,bct->bot', wfgc[i], c)
        for k in range(K):
            pre = pre + hp('or,brt->bot', wfg[i, k], _ref_shift(h, (K - 1 - k) * d))
        pre = pre + bfg[i]
        gated = jnp.tanh(pre[:, :G]) * jax.nn.sigmoid(pre[:, G:])
        rs = hp('og,bgt->bot', wrs[i], gated) + brs[i]
        h = (h + rs[:, :R]) * SQRT_HALF
        skip = skip + rs[:, R:]

    sk = jax.nn.relu(skip)
    f1 = jax.nn.relu(hp('os,bst->bot', p['f1_w'], sk) + p['f1_b'])
    mu = hp('os,bst->bot', p['f2_w_mu'], f1) + p['f2_b_mu']
    logs = hp('os,bst->bot', p['f2_w_logs'], f1) + p['f2_b_logs']
    return mu, logs                      # each (B, 1, T)


def _ref_student(z, c, flows):
    B, _, T = z.shape
    mut = jnp.zeros((B, 1, T - 1), jnp.float32)
    lgt = jnp.zeros((B, 1, T - 1), jnp.float32)
    for p in flows:
        mu_f, logs_f = _ref_flow(z, c, p)
        mu, logs = mu_f[:, :, :-1], logs_f[:, :, :-1]
        mut = mut * jnp.exp(logs) + mu
        lgt = lgt + logs
        z = z[:, :, 1:] * jnp.exp(logs) + mu
        z = jnp.pad(z, ((0, 0), (0, 0), (1, 0)))
    return z, mut, lgt


# ----------------------------------------------------------------------------
if __name__ == "__main__":
    # small config consistent with Wavenet_Student(num_blocks_student=[1, 1],
    # num_layers=3, front_channels=4, residual_channels=16, gate_channels=32,
    # skip_channels=16, kernel_size=3, cin_channels=8, causal=True)
    cfg = dict(residual=16, gate=32, skip=16, cin=8, kernel=3, front_kernel=4,
               num_blocks=1, num_layers=3)
    num_flows = 2
    B, T = 2, 128           # T on the lane axis; 128 keeps stores lane-dense

    key = jax.random.PRNGKey(0)
    kz, kc, kp = jax.random.split(key, 3)
    z = jax.random.normal(kz, (B, 1, T), jnp.float32)            # PyTorch layout (B, C, T)
    c = jax.random.normal(kc, (B, cfg['cin'], T), jnp.float32)

    flows = [init_flow_params(k, cfg) for k in jax.random.split(kp, num_flows)]
    sp = stack_student_params(flows)

    run = jax.jit(lambda zz, cc: wavenet_student(zz, cc, sp))
    z_out, mu_tot, logs_tot = run(z, c)
    jax.block_until_ready((z_out, mu_tot, logs_tot))

    assert z_out.shape == (B, 1, T)
    assert mu_tot.shape == (B, 1, T - 1)
    assert logs_tot.shape == (B, 1, T - 1)
    assert bool(jnp.all(jnp.isfinite(z_out)))

    # correctness check vs. pure-JAX reference
    z_ref, mu_ref, logs_ref = _ref_student(z, c, flows)
    np.testing.assert_allclose(np.asarray(z_out), np.asarray(z_ref), rtol=1e-3, atol=1e-3)
    np.testing.assert_allclose(np.asarray(mu_tot), np.asarray(mu_ref), rtol=1e-3, atol=1e-3)
    np.testing.assert_allclose(np.asarray(logs_tot), np.asarray(logs_ref), rtol=1e-3, atol=1e-3)

    print("KERNEL_OK")
</pallas_src>

<mosaic_0001>
module attributes {stable_mosaic.version = 11 : i64} {
  func.func @_student_kernel(%arg0: i32, %arg1: i32, %arg2: memref<1x1x128xf32, #tpu.memory_space<vmem>>, %arg3: memref<1x8x128xf32, #tpu.memory_space<vmem>>, %arg4: memref<1x4x16x1xf32, #tpu.memory_space<vmem>>, %arg5: memref<1x16x1xf32, #tpu.memory_space<vmem>>, %arg6: memref<1x3x64x56xf32, #tpu.memory_space<vmem>>, %arg7: memref<1x3x64x1xf32, #tpu.memory_space<vmem>>, %arg8: memref<1x3x32x32xf32, #tpu.memory_space<vmem>>, %arg9: memref<1x3x32x1xf32, #tpu.memory_space<vmem>>, %arg10: memref<1x16x16xf32, #tpu.memory_space<vmem>>, %arg11: memref<1x16x1xf32, #tpu.memory_space<vmem>>, %arg12: memref<1x2x16xf32, #tpu.memory_space<vmem>>, %arg13: memref<1x2x1xf32, #tpu.memory_space<vmem>>, %arg14: memref<1x1x128xf32, #tpu.memory_space<vmem>>, %arg15: memref<1x1x128xf32, #tpu.memory_space<vmem>>, %arg16: memref<1x1x128xf32, #tpu.memory_space<vmem>>, %arg17: memref<1x128xf32, #tpu.memory_space<vmem>>, %arg18: memref<1x128xf32, #tpu.memory_space<vmem>>, %arg19: memref<1x128xf32, #tpu.memory_space<vmem>>) attributes {dimension_semantics = [#tpu.dimension_semantics<parallel>, #tpu.dimension_semantics<arbitrary>], iteration_bounds = array<i64: 2, 2>, scalar_prefetch = 0 : i64, scratch_operands = 3 : i64, tpu.core_type = #tpu.core_type<tc>, window_params = [{transform_indices = @transform_0, window_bounds = array<i64: 1, 1, 128>}, {transform_indices = @transform_1, window_bounds = array<i64: 1, 8, 128>}, {transform_indices = @transform_2, window_bounds = array<i64: 1, 4, 16, 1>}, {transform_indices = @transform_3, window_bounds = array<i64: 1, 16, 1>}, {transform_indices = @transform_4, window_bounds = array<i64: 1, 3, 64, 56>}, {transform_indices = @transform_5, window_bounds = array<i64: 1, 3, 64, 1>}, {transform_indices = @transform_6, window_bounds = array<i64: 1, 3, 32, 32>}, {transform_indices = @transform_7, window_bounds = array<i64: 1, 3, 32, 1>}, {transform_indices = @transform_8, window_bounds = array<i64: 1, 16, 16>}, {transform_indices = @transform_9, window_bounds = array<i64: 1, 16, 1>}, {transform_indices = @transform_10, window_bounds = array<i64: 1, 2, 16>}, {transform_indices = @transform_11, window_bounds = array<i64: 1, 2, 1>}, {transform_indices = @transform_12, window_bounds = array<i64: 1, 1, 128>}, {transform_indices = @transform_13, window_bounds = array<i64: 1, 1, 128>}, {transform_indices = @transform_14, window_bounds = array<i64: 1, 1, 128>}]} {
    %c0_i32 = arith.constant 0 : i32
    %0 = arith.cmpi eq, %arg1, %c0_i32 : i32
    %1 = arith.extui %0 : i1 to i32
    %c0_i32_0 = arith.constant 0 : i32
    %2 = arith.cmpi ne, %1, %c0_i32_0 : i32
    scf.if %2 {
      %c0_121 = arith.constant 0 : index
      %c0_122 = arith.constant 0 : index
      %c0_123 = arith.constant 0 : index
      %216 = vector.load %arg2[%c0_121, %c0_122, %c0_123] : memref<1x1x128xf32, #tpu.memory_space<vmem>>, vector<1x1x128xf32>
      %217 = vector.shape_cast %216 : vector<1x1x128xf32> to vector<1x128xf32>
      %c0_124 = arith.constant 0 : index
      %c0_125 = arith.constant 0 : index
      %218 = vector.load %arg17[%c0_124, %c0_125] : memref<1x128xf32, #tpu.memory_space<vmem>>, vector<1x128xf32>
      tpu.vector_store %arg17[%c0_124, %c0_125], %217 {strides = array<i32>} : memref<1x128xf32, #tpu.memory_space<vmem>>, vector<1x128xf32>,
      %cst_126 = arith.constant 0.000000e+00 : f32
      %219 = vector.broadcast %cst_126 : f32 to vector<1x128xf32>
      %c0_127 = arith.constant 0 : index
      %c0_128 = arith.constant 0 : index
      %220 = vector.load %arg18[%c0_127, %c0_128] : memref<1x128xf32, #tpu.memory_space<vmem>>, vector<1x128xf32>
      tpu.vector_store %arg18[%c0_127, %c0_128], %219 {strides = array<i32>} : memref<1x128xf32, #tpu.memory_space<vmem>>, vector<1x128xf32>,
      %cst_129 = arith.constant 0.000000e+00 : f32
      %221 = vector.broadcast %cst_129 : f32 to vector<1x128xf32>
      %c0_130 = arith.constant 0 : index
      %c0_131 = arith.constant 0 : index
      %222 = vector.load %arg19[%c0_130, %c0_131] : memref<1x128xf32, #tpu.memory_space<vmem>>, vector<1x128xf32>
      tpu.vector_store %arg19[%c0_130, %c0_131], %221 {strides = array<i32>} : memref<1x128xf32, #tpu.memory_space<vmem>>, vector<1x128xf32>,
    } else {
    }
    %c0 = arith.constant 0 : index
    %c0_1 = arith.constant 0 : index
    %3 = vector.load %arg17[%c0, %c0_1] : memref<1x128xf32, #tpu.memory_space<vmem>>, vector<1x128xf32>
    %c0_2 = arith.constant 0 : index
    %c0_3 = arith.constant 0 : index
    %c0_4 = arith.constant 0 : index
    %4 = vector.load %arg3[%c0_2, %c0_3, %c0_4] : memref<1x8x128xf32, #tpu.memory_space<vmem>>, vector<1x8x128xf32>
    %5 = vector.shape_cast %4 : vector<1x8x128xf32> to vector<8x128xf32>
    %6 = tpu.iota {dimensions = array<i32: 1>} : vector<1x128xi32>
    %c0_5 = arith.constant 0 : index
    %c0_6 = arith.constant 0 : index
    %c0_7 = arith.constant 0 : index
    %c0_8 = arith.constant 0 : index
    %7 = vector.load %arg4[%c0_5, %c0_6, %c0_7, %c0_8] : memref<1x4x16x1xf32, #tpu.memory_space<vmem>>, vector<1x4x16x1xf32>
    %8 = vector.shape_cast %7 : vector<1x4x16x1xf32> to vector<4x16x1xf32>
    %cst = arith.constant 0.000000e+00 : f32
    %9 = vector.broadcast %cst : f32 to vector<16x128xf32>
    %10 = vector.extract_strided_slice %8 {offsets = [0, 0, 0], sizes = [1, 16, 1], strides = [1, 1, 1]} : vector<4x16x1xf32> to vector<1x16x1xf32>
    %11 = vector.shape_cast %10 : vector<1x16x1xf32> to vector<16x1xf32>
    %c3_i32 = arith.constant 3 : i32
    %12 = vector.broadcast %c3_i32 : i32 to vector<1x128xi32>
    %13 = arith.cmpi sge, %6, %12 : vector<1x128xi32>
    %c3_i32_9 = arith.constant 3 : i32
    %14 = tpu.dynamic_rotate %3 by %c3_i32_9 dim 1 : vector<1x128xf32>, i32 -> vector<1x128xf32>
    %cst_10 = arith.constant 0.000000e+00 : f32
    %15 = vector.broadcast %cst_10 : f32 to vector<1x128xf32>
    %16 = arith.select %13, %14, %15 : vector<1x128xi1>, vector<1x128xf32>
    %17 = vector.broadcast %11 : vector<16x1xf32> to vector<16x128xf32>
    %18 = vector.broadcast %16 : vector<1x128xf32> to vector<16x128xf32>
    %19 = arith.mulf %17, %18 : vector<16x128xf32>
    %20 = arith.addf %9, %19 : vector<16x128xf32>
    %21 = vector.extract_strided_slice %8 {offsets = [1, 0, 0], sizes = [1, 16, 1], strides = [1, 1, 1]} : vector<4x16x1xf32> to vector<1x16x1xf32>
    %22 = vector.shape_cast %21 : vector<1x16x1xf32> to vector<16x1xf32>
    %c2_i32 = arith.constant 2 : i32
    %23 = vector.broadcast %c2_i32 : i32 to vector<1x128xi32>
    %24 = arith.cmpi sge, %6, %23 : vector<1x128xi32>
    %c2_i32_11 = arith.constant 2 : i32
    %25 = tpu.dynamic_rotate %3 by %c2_i32_11 dim 1 : vector<1x128xf32>, i32 -> vector<1x128xf32>
    %cst_12 = arith.constant 0.000000e+00 : f32
    %26 = vector.broadcast %cst_12 : f32 to vector<1x128xf32>
    %27 = arith.select %24, %25, %26 : vector<1x128xi1>, vector<1x128xf32>
    %28 = vector.broadcast %22 : vector<16x1xf32> to vector<16x128xf32>
    %29 = vector.broadcast %27 : vector<1x128xf32> to vector<16x128xf32>
    %30 = arith.mulf %28, %29 : vector<16x128xf32>
    %31 = arith.addf %20, %30 : vector<16x128xf32>
    %32 = vector.extract_strided_slice %8 {offsets = [2, 0, 0], sizes = [1, 16, 1], strides = [1, 1, 1]} : vector<4x16x1xf32> to vector<1x16x1xf32>
    %33 = vector.shape_cast %32 : vector<1x16x1xf32> to vector<16x1xf32>
    %c1_i32 = arith.constant 1 : i32
    %34 = vector.broadcast %c1_i32 : i32 to vector<1x128xi32>
    %35 = arith.cmpi sge, %6, %34 : vector<1x128xi32>
    %c1_i32_13 = arith.constant 1 : i32
    %36 = tpu.dynamic_rotate %3 by %c1_i32_13 dim 1 : vector<1x128xf32>, i32 -> vector<1x128xf32>
    %cst_14 = arith.constant 0.000000e+00 : f32
    %37 = vector.broadcast %cst_14 : f32 to vector<1x128xf32>
    %38 = arith.select %35, %36, %37 : vector<1x128xi1>, vector<1x128xf32>
    %39 = vector.broadcast %33 : vector<16x1xf32> to vector<16x128xf32>
    %40 = vector.broadcast %38 : vector<1x128xf32> to vector<16x128xf32>
    %41 = arith.mulf %39, %40 : vector<16x128xf32>
    %42 = arith.addf %31, %41 : vector<16x128xf32>
    %43 = vector.extract_strided_slice %8 {offsets = [3, 0, 0], sizes = [1, 16, 1], strides = [1, 1, 1]} : vector<4x16x1xf32> to vector<1x16x1xf32>
    %44 = vector.shape_cast %43 : vector<1x16x1xf32> to vector<16x1xf32>
    %45 = vector.broadcast %44 : vector<16x1xf32> to vector<16x128xf32>
    %46 = vector.broadcast %3 : vector<1x128xf32> to vector<16x128xf32>
    %47 = arith.mulf %45, %46 : vector<16x128xf32>
    %48 = arith.addf %42, %47 : vector<16x128xf32>
    %c0_15 = arith.constant 0 : index
    %c0_16 = arith.constant 0 : index
    %c0_17 = arith.constant 0 : index
    %49 = vector.load %arg5[%c0_15, %c0_16, %c0_17] : memref<1x16x1xf32, #tpu.memory_space<vmem>>, vector<1x16x1xf32>
    %50 = vector.shape_cast %49 : vector<1x16x1xf32> to vector<16x1xf32>
    %51 = vector.broadcast %50 : vector<16x1xf32> to vector<16x128xf32>
    %52 = arith.addf %48, %51 : vector<16x128xf32>
    %cst_18 = arith.constant 0.000000e+00 : f32
    %53 = vector.broadcast %cst_18 : f32 to vector<16x128xf32>
    %54 = arith.maximumf %52, %53 : vector<16x128xf32>
    %cst_19 = arith.constant 0.000000e+00 : f32
    %55 = vector.broadcast %cst_19 : f32 to vector<16x128xf32>
    %c2_i32_20 = arith.constant 2 : i32
    %56 = tpu.dynamic_rotate %54 by %c2_i32_20 dim 1 : vector<16x128xf32>, i32 -> vector<16x128xf32>
    %cst_21 = arith.constant 0.000000e+00 : f32
    %57 = vector.shape_cast %24 : vector<1x128xi1> to vector<1x128xi1>
    %58 = vector.broadcast %57 : vector<1x128xi1> to vector<16x128xi1>
    %59 = vector.broadcast %cst_21 : f32 to vector<16x128xf32>
    %60 = arith.select %58, %56, %59 : vector<16x128xi1>, vector<16x128xf32>
    %c1_i32_22 = arith.constant 1 : i32
    %61 = tpu.dynamic_rotate %54 by %c1_i32_22 dim 1 : vector<16x128xf32>, i32 -> vector<16x128xf32>
    %cst_23 = arith.constant 0.000000e+00 : f32
    %62 = vector.shape_cast %35 : vector<1x128xi1> to vector<1x128xi1>
    %63 = vector.broadcast %62 : vector<1x128xi1> to vector<16x128xi1>
    %64 = vector.broadcast %cst_23 : f32 to vector<16x128xf32>
    %65 = arith.select %63, %61, %64 : vector<16x128xi1>, vector<16x128xf32>
    %66 = tpu.concatenate %5, %60, %65, %54 in 0 : vector<8x128xf32>, vector<16x128xf32>, vector<16x128xf32>, vector<16x128xf32> -> vector<56x128xf32>
    %c0_24 = arith.constant 0 : index
    %c0_25 = arith.constant 0 : index
    %c0_26 = arith.constant 0 : index
    %c0_27 = arith.constant 0 : index
    %67 = vector.load %arg6[%c0_24, %c0_25, %c0_26, %c0_27] : memref<1x3x64x56xf32, #tpu.memory_space<vmem>>, vector<1x1x64x56xf32>
    %68 = vector.shape_cast %67 : vector<1x1x64x56xf32> to vector<64x56xf32>
    %cst_28 = arith.constant dense<0.000000e+00> : vector<64x128xf32>
    %69 = tpu.matmul %68, %66, %cst_28 {dimension_numbers = #tpu.dot_dimension_numbers<[1], [0], [0], [1], [0, 0, 1, 1], [], []>} : vector<64x56xf32>, vector<56x128xf32>, vector<64x128xf32> -> vector<64x128xf32>
    %c0_29 = arith.constant 0 : index
    %c0_30 = arith.constant 0 : index
    %c0_31 = arith.constant 0 : index
    %c0_32 = arith.constant 0 : index
    %70 = vector.load %arg7[%c0_29, %c0_30, %c0_31, %c0_32] : memref<1x3x64x1xf32, #tpu.memory_space<vmem>>, vector<1x1x64x1xf32>
    %71 = vector.shape_cast %70 : vector<1x1x64x1xf32> to vector<64x1xf32>
    %72 = vector.broadcast %71 : vector<64x1xf32> to vector<64x128xf32>
    %73 = arith.addf %69, %72 : vector<64x128xf32>
    %74 = vector.extract_strided_slice %73 {offsets = [0, 0], sizes = [32, 128], strides = [1, 1]} : vector<64x128xf32> to vector<32x128xf32>
    %75 = math.tanh %74 : vector<32x128xf32>
    %76 = vector.extract_strided_slice %73 {offsets = [32, 0], sizes = [32, 128], strides = [1, 1]} : vector<64x128xf32> to vector<32x128xf32>
    %77 = arith.negf %76 : vector<32x128xf32>
    %78 = math.exp %77 : vector<32x128xf32>
    %cst_33 = arith.constant 1.000000e+00 : f32
    %79 = vector.broadcast %cst_33 : f32 to vector<32x128xf32>
    %80 = arith.addf %79, %78 : vector<32x128xf32>
    %81 = arith.divf %79, %80 : vector<32x128xf32>
    %82 = arith.mulf %75, %81 : vector<32x128xf32>
    %c0_34 = arith.constant 0 : index
    %c0_35 = arith.constant 0 : index
    %c0_36 = arith.constant 0 : index
    %c0_37 = arith.constant 0 : index
    %83 = vector.load %arg8[%c0_34, %c0_35, %c0_36, %c0_37] : memref<1x3x32x32xf32, #tpu.memory_space<vmem>>, vector<1x1x32x32xf32>
    %84 = vector.shape_cast %83 : vector<1x1x32x32xf32> to vector<32x32xf32>
    %cst_38 = arith.constant dense<0.000000e+00> : vector<32x128xf32>
    %85 = tpu.matmul %84, %82, %cst_38 {dimension_numbers = #tpu.dot_dimension_numbers<[1], [0], [0], [1], [0, 0, 1, 1], [], []>} : vector<32x32xf32>, vector<32x128xf32>, vector<32x128xf32> -> vector<32x128xf32>
    %c0_39 = arith.constant 0 : index
    %c0_40 = arith.constant 0 : index
    %c0_41 = arith.constant 0 : index
    %c0_42 = arith.constant 0 : index
    %86 = vector.load %arg9[%c0_39, %c0_40, %c0_41, %c0_42] : memref<1x3x32x1xf32, #tpu.memory_space<vmem>>, vector<1x1x32x1xf32>
    %87 = vector.shape_cast %86 : vector<1x1x32x1xf32> to vector<32x1xf32>
    %88 = vector.broadcast %87 : vector<32x1xf32> to vector<32x128xf32>
    %89 = arith.addf %85, %88 : vector<32x128xf32>
    %90 = vector.extract_strided_slice %89 {offsets = [0, 0], sizes = [16, 128], strides = [1, 1]} : vector<32x128xf32> to vector<16x128xf32>
    %91 = arith.addf %54, %90 : vector<16x128xf32>
    %cst_43 = arith.constant 0.707106769 : f32
    %92 = vector.broadcast %cst_43 : f32 to vector<16x128xf32>
    %93 = arith.mulf %91, %92 : vector<16x128xf32>
    %94 = vector.extract_strided_slice %89 {offsets = [16, 0], sizes = [16, 128], strides = [1, 1]} : vector<32x128xf32> to vector<16x128xf32>
    %95 = arith.addf %55, %94 : vector<16x128xf32>
    %c4_i32 = arith.constant 4 : i32
    %96 = vector.broadcast %c4_i32 : i32 to vector<1x128xi32>
    %97 = arith.cmpi sge, %6, %96 : vector<1x128xi32>
    %c4_i32_44 = arith.constant 4 : i32
    %98 = tpu.dynamic_rotate %93 by %c4_i32_44 dim 1 : vector<16x128xf32>, i32 -> vector<16x128xf32>
    %cst_45 = arith.constant 0.000000e+00 : f32
    %99 = vector.shape_cast %97 : vector<1x128xi1> to vector<1x128xi1>
    %100 = vector.broadcast %99 : vector<1x128xi1> to vector<16x128xi1>
    %101 = vector.broadcast %cst_45 : f32 to vector<16x128xf32>
    %102 = arith.select %100, %98, %101 : vector<16x128xi1>, vector<16x128xf32>
    %c2_i32_46 = arith.constant 2 : i32
    %103 = tpu.dynamic_rotate %93 by %c2_i32_46 dim 1 : vector<16x128xf32>, i32 -> vector<16x128xf32>
    %cst_47 = arith.constant 0.000000e+00 : f32
    %104 = vector.shape_cast %24 : vector<1x128xi1> to vector<1x128xi1>
    %105 = vector.broadcast %104 : vector<1x128xi1> to vector<16x128xi1>
    %106 = vector.broadcast %cst_47 : f32 to vector<16x128xf32>
    %107 = arith.select %105, %103, %106 : vector<16x128xi1>, vector<16x128xf32>
    %108 = tpu.concatenate %5, %102, %107, %93 in 0 : vector<8x128xf32>, vector<16x128xf32>, vector<16x128xf32>, vector<16x128xf32> -> vector<56x128xf32>
    %c0_48 = arith.constant 0 : index
    %c1 = arith.constant 1 : index
    %c0_49 = arith.constant 0 : index
    %c0_50 = arith.constant 0 : index
    %109 = vector.load %arg6[%c0_48, %c1, %c0_49, %c0_50] : memref<1x3x64x56xf32, #tpu.memory_space<vmem>>, vector<1x1x64x56xf32>
    %110 = vector.shape_cast %109 : vector<1x1x64x56xf32> to vector<64x56xf32>
    %cst_51 = arith.constant dense<0.000000e+00> : vector<64x128xf32>
    %111 = tpu.matmul %110, %108, %cst_51 {dimension_numbers = #tpu.dot_dimension_numbers<[1], [0], [0], [1], [0, 0, 1, 1], [], []>} : vector<64x56xf32>, vector<56x128xf32>, vector<64x128xf32> -> vector<64x128xf32>
    %c0_52 = arith.constant 0 : index
    %c1_53 = arith.constant 1 : index
    %c0_54 = arith.constant 0 : index
    %c0_55 = arith.constant 0 : index
    %112 = vector.load %arg7[%c0_52, %c1_53, %c0_54, %c0_55] : memref<1x3x64x1xf32, #tpu.memory_space<vmem>>, vector<1x1x64x1xf32>
    %113 = vector.shape_cast %112 : vector<1x1x64x1xf32> to vector<64x1xf32>
    %114 = vector.broadcast %113 : vector<64x1xf32> to vector<64x128xf32>
    %115 = arith.addf %111, %114 : vector<64x128xf32>
    %116 = vector.extract_strided_slice %115 {offsets = [0, 0], sizes = [32, 128], strides = [1, 1]} : vector<64x128xf32> to vector<32x128xf32>
    %117 = math.tanh %116 : vector<32x128xf32>
    %118 = vector.extract_strided_slice %115 {offsets = [32, 0], sizes = [32, 128], strides = [1, 1]} : vector<64x128xf32> to vector<32x128xf32>
    %119 = arith.negf %118 : vector<32x128xf32>
    %120 = math.exp %119 : vector<32x128xf32>
    %cst_56 = arith.constant 1.000000e+00 : f32
    %121 = vector.broadcast %cst_56 : f32 to vector<32x128xf32>
    %122 = arith.addf %121, %120 : vector<32x128xf32>
    %123 = arith.divf %121, %122 : vector<32x128xf32>
    %124 = arith.mulf %117, %123 : vector<32x128xf32>
    %c0_57 = arith.constant 0 : index
    %c1_58 = arith.constant 1 : index
    %c0_59 = arith.constant 0 : index
    %c0_60 = arith.constant 0 : index
    %125 = vector.load %arg8[%c0_57, %c1_58, %c0_59, %c0_60] : memref<1x3x32x32xf32, #tpu.memory_space<vmem>>, vector<1x1x32x32xf32>
    %126 = vector.shape_cast %125 : vector<1x1x32x32xf32> to vector<32x32xf32>
    %cst_61 = arith.constant dense<0.000000e+00> : vector<32x128xf32>
    %127 = tpu.matmul %126, %124, %cst_61 {dimension_numbers = #tpu.dot_dimension_numbers<[1], [0], [0], [1], [0, 0, 1, 1], [], []>} : vector<32x32xf32>, vector<32x128xf32>, vector<32x128xf32> -> vector<32x128xf32>
    %c0_62 = arith.constant 0 : index
    %c1_63 = arith.constant 1 : index
    %c0_64 = arith.constant 0 : index
    %c0_65 = arith.constant 0 : index
    %128 = vector.load %arg9[%c0_62, %c1_63, %c0_64, %c0_65] : memref<1x3x32x1xf32, #tpu.memory_space<vmem>>, vector<1x1x32x1xf32>
    %129 = vector.shape_cast %128 : vector<1x1x32x1xf32> to vector<32x1xf32>
    %130 = vector.broadcast %129 : vector<32x1xf32> to vector<32x128xf32>
    %131 = arith.addf %127, %130 : vector<32x128xf32>
    %132 = vector.extract_strided_slice %131 {offsets = [0, 0], sizes = [16, 128], strides = [1, 1]} : vector<32x128xf32> to vector<16x128xf32>
    %133 = arith.addf %93, %132 : vector<16x128xf32>
    %cst_66 = arith.constant 0.707106769 : f32
    %134 = vector.broadcast %cst_66 : f32 to vector<16x128xf32>
    %135 = arith.mulf %133, %134 : vector<16x128xf32>
    %136 = vector.extract_strided_slice %131 {offsets = [16, 0], sizes = [16, 128], strides = [1, 1]} : vector<32x128xf32> to vector<16x128xf32>
    %137 = arith.addf %95, %136 : vector<16x128xf32>
    %c8_i32 = arith.constant 8 : i32
    %138 = vector.broadcast %c8_i32 : i32 to vector<1x128xi32>
    %139 = arith.cmpi sge, %6, %138 : vector<1x128xi32>
    %c8_i32_67 = arith.constant 8 : i32
    %140 = tpu.dynamic_rotate %135 by %c8_i32_67 dim 1 : vector<16x128xf32>, i32 -> vector<16x128xf32>
    %cst_68 = arith.constant 0.000000e+00 : f32
    %141 = vector.shape_cast %139 : vector<1x128xi1> to vector<1x128xi1>
    %142 = vector.broadcast %141 : vector<1x128xi1> to vector<16x128xi1>
    %143 = vector.broadcast %cst_68 : f32 to vector<16x128xf32>
    %144 = arith.select %142, %140, %143 : vector<16x128xi1>, vector<16x128xf32>
    %c4_i32_69 = arith.constant 4 : i32
    %145 = tpu.dynamic_rotate %135 by %c4_i32_69 dim 1 : vector<16x128xf32>, i32 -> vector<16x128xf32>
    %cst_70 = arith.constant 0.000000e+00 : f32
    %146 = vector.shape_cast %97 : vector<1x128xi1> to vector<1x128xi1>
    %147 = vector.broadcast %146 : vector<1x128xi1> to vector<16x128xi1>
    %148 = vector.broadcast %cst_70 : f32 to vector<16x128xf32>
    %149 = arith.select %147, %145, %148 : vector<16x128xi1>, vector<16x128xf32>
    %150 = tpu.concatenate %5, %144, %149, %135 in 0 : vector<8x128xf32>, vector<16x128xf32>, vector<16x128xf32>, vector<16x128xf32> -> vector<56x128xf32>
    %c0_71 = arith.constant 0 : index
    %c2 = arith.constant 2 : index
    %c0_72 = arith.constant 0 : index
    %c0_73 = arith.constant 0 : index
    %151 = vector.load %arg6[%c0_71, %c2, %c0_72, %c0_73] : memref<1x3x64x56xf32, #tpu.memory_space<vmem>>, vector<1x1x64x56xf32>
    %152 = vector.shape_cast %151 : vector<1x1x64x56xf32> to vector<64x56xf32>
    %cst_74 = arith.constant dense<0.000000e+00> : vector<64x128xf32>
    %153 = tpu.matmul %152, %150, %cst_74 {dimension_numbers = #tpu.dot_dimension_numbers<[1], [0], [0], [1], [0, 0, 1, 1], [], []>} : vector<64x56xf32>, vector<56x128xf32>, vector<64x128xf32> -> vector<64x128xf32>
    %c0_75 = arith.constant 0 : index
    %c2_76 = arith.constant 2 : index
    %c0_77 = arith.constant 0 : index
    %c0_78 = arith.constant 0 : index
    %154 = vector.load %arg7[%c0_75, %c2_76, %c0_77, %c0_78] : memref<1x3x64x1xf32, #tpu.memory_space<vmem>>, vector<1x1x64x1xf32>
    %155 = vector.shape_cast %154 : vector<1x1x64x1xf32> to vector<64x1xf32>
    %156 = vector.broadcast %155 : vector<64x1xf32> to vector<64x128xf32>
    %157 = arith.addf %153, %156 : vector<64x128xf32>
    %158 = vector.extract_strided_slice %157 {offsets = [0, 0], sizes = [32, 128], strides = [1, 1]} : vector<64x128xf32> to vector<32x128xf32>
    %159 = math.tanh %158 : vector<32x128xf32>
    %160 = vector.extract_strided_slice %157 {offsets = [32, 0], sizes = [32, 128], strides = [1, 1]} : vector<64x128xf32> to vector<32x128xf32>
    %161 = arith.negf %160 : vector<32x128xf32>
    %162 = math.exp %161 : vector<32x128xf32>
    %cst_79 = arith.constant 1.000000e+00 : f32
    %163 = vector.broadcast %cst_79 : f32 to vector<32x128xf32>
    %164 = arith.addf %163, %162 : vector<32x128xf32>
    %165 = arith.divf %163, %164 : vector<32x128xf32>
    %166 = arith.mulf %159, %165 : vector<32x128xf32>
    %c0_80 = arith.constant 0 : index
    %c2_81 = arith.constant 2 : index
    %c0_82 = arith.constant 0 : index
    %c0_83 = arith.constant 0 : index
    %167 = vector.load %arg8[%c0_80, %c2_81, %c0_82, %c0_83] : memref<1x3x32x32xf32, #tpu.memory_space<vmem>>, vector<1x1x32x32xf32>
    %168 = vector.shape_cast %167 : vector<1x1x32x32xf32> to vector<32x32xf32>
    %cst_84 = arith.constant dense<0.000000e+00> : vector<32x128xf32>
    %169 = tpu.matmul %168, %166, %cst_84 {dimension_numbers = #tpu.dot_dimension_numbers<[1], [0], [0], [1], [0, 0, 1, 1], [], []>} : vector<32x32xf32>, vector<32x128xf32>, vector<32x128xf32> -> vector<32x128xf32>
    %c0_85 = arith.constant 0 : index
    %c2_86 = arith.constant 2 : index
    %c0_87 = arith.constant 0 : index
    %c0_88 = arith.constant 0 : index
    %170 = vector.load %arg9[%c0_85, %c2_86, %c0_87, %c0_88] : memref<1x3x32x1xf32, #tpu.memory_space<vmem>>, vector<1x1x32x1xf32>
    %171 = vector.shape_cast %170 : vector<1x1x32x1xf32> to vector<32x1xf32>
    %172 = vector.broadcast %171 : vector<32x1xf32> to vector<32x128xf32>
    %173 = arith.addf %169, %172 : vector<32x128xf32>
    %174 = vector.extract_strided_slice %173 {offsets = [16, 0], sizes = [16, 128], strides = [1, 1]} : vector<32x128xf32> to vector<16x128xf32>
    %175 = arith.addf %137, %174 : vector<16x128xf32>
    %cst_89 = arith.constant 0.000000e+00 : f32
    %176 = vector.broadcast %cst_89 : f32 to vector<16x128xf32>
    %177 = arith.maximumf %175, %176 : vector<16x128xf32>
    %c0_90 = arith.constant 0 : index
    %c0_91 = arith.constant 0 : index
    %c0_92 = arith.constant 0 : index
    %178 = vector.load %arg10[%c0_90, %c0_91, %c0_92] : memref<1x16x16xf32, #tpu.memory_space<vmem>>, vector<1x16x16xf32>
    %179 = vector.shape_cast %178 : vector<1x16x16xf32> to vector<16x16xf32>
    %cst_93 = arith.constant dense<0.000000e+00> : vector<16x128xf32>
    %180 = tpu.matmul %179, %177, %cst_93 {dimension_numbers = #tpu.dot_dimension_numbers<[1], [0], [0], [1], [0, 0, 1, 1], [], []>} : vector<16x16xf32>, vector<16x128xf32>, vector<16x128xf32> -> vector<16x128xf32>
    %c0_94 = arith.constant 0 : index
    %c0_95 = arith.constant 0 : index
    %c0_96 = arith.constant 0 : index
    %181 = vector.load %arg11[%c0_94, %c0_95, %c0_96] : memref<1x16x1xf32, #tpu.memory_space<vmem>>, vector<1x16x1xf32>
    %182 = vector.shape_cast %181 : vector<1x16x1xf32> to vector<16x1xf32>
    %183 = vector.broadcast %182 : vector<16x1xf32> to vector<16x128xf32>
    %184 = arith.addf %180, %183 : vector<16x128xf32>
    %cst_97 = arith.constant 0.000000e+00 : f32
    %185 = vector.broadcast %cst_97 : f32 to vector<16x128xf32>
    %186 = arith.maximumf %184, %185 : vector<16x128xf32>
    %c0_98 = arith.constant 0 : index
    %c0_99 = arith.constant 0 : index
    %c0_100 = arith.constant 0 : index
    %187 = vector.load %arg12[%c0_98, %c0_99, %c0_100] : memref<1x2x16xf32, #tpu.memory_space<vmem>>, vector<1x2x16xf32>
    %188 = vector.shape_cast %187 : vector<1x2x16xf32> to vector<2x16xf32>
    %cst_101 = arith.constant dense<0.000000e+00> : vector<2x128xf32>
    %189 = tpu.matmul %188, %186, %cst_101 {dimension_numbers = #tpu.dot_dimension_numbers<[1], [0], [0], [1], [0, 0, 1, 1], [], []>} : vector<2x16xf32>, vector<16x128xf32>, vector<2x128xf32> -> vector<2x128xf32>
    %c0_102 = arith.constant 0 : index
    %c0_103 = arith.constant 0 : index
    %c0_104 = arith.constant 0 : index
    %190 = vector.load %arg13[%c0_102, %c0_103, %c0_104] : memref<1x2x1xf32, #tpu.memory_space<vmem>>, vector<1x2x1xf32>
    %191 = vector.shape_cast %190 : vector<1x2x1xf32> to vector<2x1xf32>
    %192 = vector.broadcast %191 : vector<2x1xf32> to vector<2x128xf32>
    %193 = arith.addf %189, %192 : vector<2x128xf32>
    %194 = vector.extract_strided_slice %193 {offsets = [0, 0], sizes = [1, 128], strides = [1, 1]} : vector<2x128xf32> to vector<1x128xf32>
    %195 = vector.extract_strided_slice %193 {offsets = [1, 0], sizes = [1, 128], strides = [1, 1]} : vector<2x128xf32> to vector<1x128xf32>
    %196 = math.exp %195 : vector<1x128xf32>
    %c0_105 = arith.constant 0 : index
    %c0_106 = arith.constant 0 : index
    %197 = vector.load %arg18[%c0_105, %c0_106] : memref<1x128xf32, #tpu.memory_space<vmem>>, vector<1x128xf32>
    %198 = arith.mulf %197, %196 : vector<1x128xf32>
    %199 = arith.addf %198, %194 : vector<1x128xf32>
    %c0_107 = arith.constant 0 : index
    %c0_108 = arith.constant 0 : index
    %200 = vector.load %arg18[%c0_107, %c0_108] : memref<1x128xf32, #tpu.memory_space<vmem>>, vector<1x128xf32>
    tpu.vector_store %arg18[%c0_107, %c0_108], %199 {strides = array<i32>} : memref<1x128xf32, #tpu.memory_space<vmem>>, vector<1x128xf32>,
    %c0_109 = arith.constant 0 : index
    %c0_110 = arith.constant 0 : index
    %201 = vector.load %arg19[%c0_109, %c0_110] : memref<1x128xf32, #tpu.memory_space<vmem>>, vector<1x128xf32>
    %202 = arith.addf %201, %195 : vector<1x128xf32>
    %c0_111 = arith.constant 0 : index
    %c0_112 = arith.constant 0 : index
    %203 = vector.load %arg19[%c0_111, %c0_112] : memref<1x128xf32, #tpu.memory_space<vmem>>, vector<1x128xf32>
    tpu.vector_store %arg19[%c0_111, %c0_112], %202 {strides = array<i32>} : memref<1x128xf32, #tpu.memory_space<vmem>>, vector<1x128xf32>,
    %c1_i32_113 = arith.constant 1 : i32
    %204 = tpu.dynamic_rotate %196 by %c1_i32_113 dim 1 : vector<1x128xf32>, i32 -> vector<1x128xf32>
    %cst_114 = arith.constant 0.000000e+00 : f32
    %205 = vector.broadcast %cst_114 : f32 to vector<1x128xf32>
    %206 = arith.select %35, %204, %205 : vector<1x128xi1>, vector<1x128xf32>
    %207 = arith.mulf %3, %206 : vector<1x128xf32>
    %c1_i32_115 = arith.constant 1 : i32
    %208 = tpu.dynamic_rotate %194 by %c1_i32_115 dim 1 : vector<1x128xf32>, i32 -> vector<1x128xf32>
    %cst_116 = arith.constant 0.000000e+00 : f32
    %209 = vector.broadcast %cst_116 : f32 to vector<1x128xf32>
    %210 = arith.select %35, %208, %209 : vector<1x128xi1>, vector<1x128xf32>
    %211 = arith.addf %207, %210 : vector<1x128xf32>
    %c0_117 = arith.constant 0 : index
    %c0_118 = arith.constant 0 : index
    %212 = vector.load %arg17[%c0_117, %c0_118] : memref<1x128xf32, #tpu.memory_space<vmem>>, vector<1x128xf32>
    tpu.vector_store %arg17[%c0_117, %c0_118], %211 {strides = array<i32>} : memref<1x128xf32, #tpu.memory_space<vmem>>, vector<1x128xf32>,
    %c1_i32_119 = arith.constant 1 : i32
    %213 = arith.cmpi eq, %arg1, %c1_i32_119 : i32
    %214 = arith.extui %213 : i1 to i32
    %c0_i32_120 = arith.constant 0 : i32
    %215 = arith.cmpi ne, %214, %c0_i32_120 : i32
    scf.if %215 {
      %c0_121 = arith.constant 0 : index
      %c0_122 = arith.constant 0 : index
      %216 = vector.load %arg17[%c0_121, %c0_122] : memref<1x128xf32, #tpu.memory_space<vmem>>, vector<1x128xf32>
      %c0_123 = arith.constant 0 : index
      %c0_124 = arith.constant 0 : index
      %c0_125 = arith.constant 0 : index
      %217 = vector.load %arg14[%c0_123, %c0_124, %c0_125] : memref<1x1x128xf32, #tpu.memory_space<vmem>>, vector<1x1x128xf32>
      %218 = vector.shape_cast %217 : vector<1x1x128xf32> to vector<1x128xf32>
      %219 = vector.shape_cast %216 : vector<1x128xf32> to vector<1x1x128xf32>
      tpu.vector_store %arg14[%c0_123, %c0_124, %c0_125], %219 {strides = array<i32>} : memref<1x1x128xf32, #tpu.memory_space<vmem>>, vector<1x1x128xf32>,
      %c0_126 = arith.constant 0 : index
      %c0_127 = arith.constant 0 : index
      %220 = vector.load %arg18[%c0_126, %c0_127] : memref<1x128xf32, #tpu.memory_space<vmem>>, vector<1x128xf32>
      %c0_128 = arith.constant 0 : index
      %c0_129 = arith.constant 0 : index
      %c0_130 = arith.constant 0 : index
      %221 = vector.load %arg15[%c0_128, %c0_129, %c0_130] : memref<1x1x128xf32, #tpu.memory_space<vmem>>, vector<1x1x128xf32>
      %222 = vector.shape_cast %221 : vector<1x1x128xf32> to vector<1x128xf32>
      %223 = vector.shape_cast %220 : vector<1x128xf32> to vector<1x1x128xf32>
      tpu.vector_store %arg15[%c0_128, %c0_129, %c0_130], %223 {strides = array<i32>} : memref<1x1x128xf32, #tpu.memory_space<vmem>>, vector<1x1x128xf32>,
      %c0_131 = arith.constant 0 : index
      %c0_132 = arith.constant 0 : index
      %224 = vector.load %arg19[%c0_131, %c0_132] : memref<1x128xf32, #tpu.memory_space<vmem>>, vector<1x128xf32>
      %c0_133 = arith.constant 0 : index
      %c0_134 = arith.constant 0 : index
      %c0_135 = arith.constant 0 : index
      %225 = vector.load %arg16[%c0_133, %c0_134, %c0_135] : memref<1x1x128xf32, #tpu.memory_space<vmem>>, vector<1x1x128xf32>
      %226 = vector.shape_cast %225 : vector<1x1x128xf32> to vector<1x128xf32>
      %227 = vector.shape_cast %224 : vector<1x128xf32> to vector<1x1x128xf32>
      tpu.vector_store %arg16[%c0_133, %c0_134, %c0_135], %227 {strides = array<i32>} : memref<1x1x128xf32, #tpu.memory_space<vmem>>, vector<1x1x128xf32>,
    } else {
    }
    return
  }
  func.func @transform_0(%arg0: i32, %arg1: i32) -> (i32, i32, i32) {
    %c0_i32 = arith.constant 0 : i32
    %c0_i32_0 = arith.constant 0 : i32
    %c0_i32_1 = arith.constant 0 : i32
    return %arg0, %c0_i32, %c0_i32_0 : i32, i32, i32
  }
  func.func @transform_1(%arg0: i32, %arg1: i32) -> (i32, i32, i32) {
    %c0_i32 = arith.constant 0 : i32
    %c0_i32_0 = arith.constant 0 : i32
    %c0_i32_1 = arith.constant 0 : i32
    return %arg0, %c0_i32, %c0_i32_0 : i32, i32, i32
  }
  func.func @transform_2(%arg0: i32, %arg1: i32) -> (i32, i32, i32, i32) {
    %c0_i32 = arith.constant 0 : i32
    %c0_i32_0 = arith.constant 0 : i32
    %c0_i32_1 = arith.constant 0 : i32
    %c0_i32_2 = arith.constant 0 : i32
    return %arg1, %c0_i32, %c0_i32_0, %c0_i32_1 : i32, i32, i32, i32
  }
  func.func @transform_3(%arg0: i32, %arg1: i32) -> (i32, i32, i32) {
    %c0_i32 = arith.constant 0 : i32
    %c0_i32_0 = arith.constant 0 : i32
    %c0_i32_1 = arith.constant 0 : i32
    return %arg1, %c0_i32, %c0_i32_0 : i32, i32, i32
  }
  func.func @transform_4(%arg0: i32, %arg1: i32) -> (i32, i32, i32, i32) {
    %c0_i32 = arith.constant 0 : i32
    %c0_i32_0 = arith.constant 0 : i32
    %c0_i32_1 = arith.constant 0 : i32
    %c0_i32_2 = arith.constant 0 : i32
    return %arg1, %c0_i32, %c0_i32_0, %c0_i32_1 : i32, i32, i32, i32
  }
  func.func @transform_5(%arg0: i32, %arg1: i32) -> (i32, i32, i32, i32) {
    %c0_i32 = arith.constant 0 : i32
    %c0_i32_0 = arith.constant 0 : i32
    %c0_i32_1 = arith.constant 0 : i32
    %c0_i32_2 = arith.constant 0 : i32
    return %arg1, %c0_i32, %c0_i32_0, %c0_i32_1 : i32, i32, i32, i32
  }
  func.func @transform_6(%arg0: i32, %arg1: i32) -> (i32, i32, i32, i32) {
    %c0_i32 = arith.constant 0 : i32
    %c0_i32_0 = arith.constant 0 : i32
    %c0_i32_1 = arith.constant 0 : i32
    %c0_i32_2 = arith.constant 0 : i32
    return %arg1, %c0_i32, %c0_i32_0, %c0_i32_1 : i32, i32, i32, i32
  }
  func.func @transform_7(%arg0: i32, %arg1: i32) -> (i32, i32, i32, i32) {
    %c0_i32 = arith.constant 0 : i32
    %c0_i32_0 = arith.constant 0 : i32
    %c0_i32_1 = arith.constant 0 : i32
    %c0_i32_2 = arith.constant 0 : i32
    return %arg1, %c0_i32, %c0_i32_0, %c0_i32_1 : i32, i32, i32, i32
  }
  func.func @transform_8(%arg0: i32, %arg1: i32) -> (i32, i32, i32) {
    %c0_i32 = arith.constant 0 : i32
    %c0_i32_0 = arith.constant 0 : i32
    %c0_i32_1 = arith.constant 0 : i32
    return %arg1, %c0_i32, %c0_i32_0 : i32, i32, i32
  }
  func.func @transform_9(%arg0: i32, %arg1: i32) -> (i32, i32, i32) {
    %c0_i32 = arith.constant 0 : i32
    %c0_i32_0 = arith.constant 0 : i32
    %c0_i32_1 = arith.constant 0 : i32
    return %arg1, %c0_i32, %c0_i32_0 : i32, i32, i32
  }
  func.func @transform_10(%arg0: i32, %arg1: i32) -> (i32, i32, i32) {
    %c0_i32 = arith.constant 0 : i32
    %c0_i32_0 = arith.constant 0 : i32
    %c0_i32_1 = arith.constant 0 : i32
    return %arg1, %c0_i32, %c0_i32_0 : i32, i32, i32
  }
  func.func @transform_11(%arg0: i32, %arg1: i32) -> (i32, i32, i32) {
    %c0_i32 = arith.constant 0 : i32
    %c0_i32_0 = arith.constant 0 : i32
    %c0_i32_1 = arith.constant 0 : i32
    return %arg1, %c0_i32, %c0_i32_0 : i32, i32, i32
  }
  func.func @transform_12(%arg0: i32, %arg1: i32) -> (i32, i32, i32) {
    %c0_i32 = arith.constant 0 : i32
    %c0_i32_0 = arith.constant 0 : i32
    %c0_i32_1 = arith.constant 0 : i32
    return %arg0, %c0_i32, %c0_i32_0 : i32, i32, i32
  }
  func.func @transform_13(%arg0: i32, %arg1: i32) -> (i32, i32, i32) {
    %c0_i32 = arith.constant 0 : i32
    %c0_i32_0 = arith.constant 0 : i32
    %c0_i32_1 = arith.constant 0 : i32
    return %arg0, %c0_i32, %c0_i32_0 : i32, i32, i32
  }
  func.func @transform_14(%arg0: i32, %arg1: i32) -> (i32, i32, i32) {
    %c0_i32 = arith.constant 0 : i32
    %c0_i32_0 = arith.constant 0 : i32
    %c0_i32_1 = arith.constant 0 : i32
    return %arg0, %c0_i32, %c0_i32_0 : i32, i32, i32
  }
}

</mosaic_0001>

<llo_original>
// kernel: _lambda_.1
$region0: #{_lambda_.1}
  #allocation0 [shape = 'u32[]', space=smem, size = 0x4, offset = 0x4, fixed_abs, tag = 'smem constant byte address 0x4 - core index']
  #allocation1 [shape = 'u32[144,128]{1,0:T(1,128)}', space=vmem, size = 0x12000, scoped, tag = 'internal scratch']
  #allocation2 [shape = 'f32[1,128]{1,0:T(1,128)}', space=vmem, size = 0x200, scoped, tag = 'scratch operand']
  #allocation3 [shape = 'f32[1,128]{1,0:T(1,128)}', space=vmem, size = 0x200, scoped, tag = 'scratch operand']
  #allocation4 [shape = 'f32[1,128]{1,0:T(1,128)}', space=vmem, size = 0x200, scoped, tag = 'scratch operand']
  %s0 = inlined_call_operand.hbm [shape: f32[2,1,128], index: 0, kind: input, shape index: {}]
  %s1 = inlined_call_operand.hbm [shape: f32[2,8,128], index: 1, kind: input, shape index: {}]
  %s2 = inlined_call_operand.hbm [shape: f32[2,4,16,1], index: 2, kind: input, shape index: {}]
  %s3 = inlined_call_operand.hbm [shape: f32[2,16,1], index: 3, kind: input, shape index: {}]
  %s4 = inlined_call_operand.hbm [shape: f32[2,3,64,56], index: 4, kind: input, shape index: {}]
  %s5 = inlined_call_operand.hbm [shape: f32[2,3,64,1], index: 5, kind: input, shape index: {}]
  %s6 = inlined_call_operand.hbm [shape: f32[2,3,32,32], index: 6, kind: input, shape index: {}]
  %s7 = inlined_call_operand.hbm [shape: f32[2,3,32,1], index: 7, kind: input, shape index: {}]
  %s8 = inlined_call_operand.hbm [shape: f32[2,16,16], index: 8, kind: input, shape index: {}]
  %s9 = inlined_call_operand.hbm [shape: f32[2,16,1], index: 9, kind: input, shape index: {}]
  %s10 = inlined_call_operand.vmem [shape: f32[2,2,16], index: 10, kind: input, shape index: {}]
  %s11 = inlined_call_operand.vmem [shape: f32[2,2,1], index: 11, kind: input, shape index: {}]
  %s12 = inlined_call_operand.hbm [shape: f32[2,1,128], index: 12, kind: output, shape index: {0}]
  %s13 = inlined_call_operand.hbm [shape: f32[2,1,128], index: 13, kind: output, shape index: {1}]
  %s14 = inlined_call_operand.hbm [shape: f32[2,1,128], index: 14, kind: output, shape index: {2}]
  %15 = xla_tuple %s12, %s13, %s14
  %s16 = sld [smem:[#allocation0]]
  $region145: #{_lambda_.1} parent=0
    _
  %s18 = ssub.s32 1, %s16
  %s19 = scalar_select 0, %s18, %s16
  $region1: #{_lambda_.1} parent=0
    #allocation5 [shape = 'u8[1024]{0}', space=vmem, size = 0x400, scoped, tag = 'input window, operand 0']
    #allocation6 [shape = 's32[2]{0}', space=sflag, size = 0x8, scoped, tag = 'scoped memory for _lambda_.1']
    #allocation7 [shape = 's32[2]{0}', space=sflag, size = 0x8, scoped, tag = 'scoped memory for _lambda_.1']
    #allocation8 [shape = 'u8[8192]{0}', space=vmem, size = 0x2000, scoped, tag = 'input window, operand 1']
    #allocation9 [shape = 's32[2]{0}', space=sflag, size = 0x8, scoped, tag = 'scoped memory for _lambda_.1']
    #allocation10 [shape = 'u8[65536]{0}', space=vmem, size = 0x10000, scoped, tag = 'input window, operand 2']
    #allocation11 [shape = 'u8[16384]{0}', space=vmem, size = 0x4000, scoped, tag = 'input window, operand 3']
    #allocation12 [shape = 's32[2]{0}', space=sflag, size = 0x8, scoped, tag = 'scoped memory for _lambda_.1']
    #allocation13 [shape = 'u8[196608]{0}', space=vmem, size = 0x30000, scoped, tag = 'input window, operand 4']
    #allocation14 [shape = 'u8[196608]{0}', space=vmem, size = 0x30000, scoped, tag = 'input window, operand 5']
    #allocation15 [shape = 's32[2]{0}', space=sflag, size = 0x8, scoped, tag = 'scoped memory for _lambda_.1']
    #allocation16 [shape = 'u8[98304]{0}', space=vmem, size = 0x18000, scoped, tag = 'input window, operand 6']
    #allocation17 [shape = 'u8[98304]{0}', space=vmem, size = 0x18000, scoped, tag = 'input window, operand 7']
    #allocation18 [shape = 's32[2]{0}', space=sflag, size = 0x8, scoped, tag = 'scoped memory for _lambda_.1']
    #allocation19 [shape = 'u8[16384]{0}', space=vmem, size = 0x4000, scoped, tag = 'input window, operand 8']
    #allocation20 [shape = 'u8[16384]{0}', space=vmem, size = 0x4000, scoped, tag = 'input window, operand 9']
    #allocation21 [shape = 's32[2]{0}', space=sflag, size = 0x8, scoped, tag = 'scoped memory for _lambda_.1']
    #allocation22 [shape = 'u8[1024]{0}', space=vmem, size = 0x400, scoped, tag = 'output window, operand 0']
    #allocation23 [shape = 'u8[1024]{0}', space=vmem, size = 0x400, scoped, tag = 'output window, operand 1']
    #allocation24 [shape = 's32[2]{0}', space=sflag, size = 0x8, scoped, tag = 'scoped memory for _lambda_.1']
    #allocation25 [shape = 'u8[1024]{0}', space=vmem, size = 0x400, scoped, tag = 'output window, operand 2']
    %20 = vsyncpa [#allocation6], 0
    %s21 = scalar_lea.sflag [#allocation6], 1
    %22 = vsyncpa %s21, 0
    %23 = vsyncpa [#allocation9], 0
    %s24 = scalar_lea.sflag [#allocation9], 1
    %25 = vsyncpa %s24, 0
    %26 = vsyncpa [#allocation12], 0
    %s27 = scalar_lea.sflag [#allocation12], 1
    %28 = vsyncpa %s27, 0
    %29 = vsyncpa [#allocation15], 0
    %s30 = scalar_lea.sflag [#allocation15], 1
    %31 = vsyncpa %s30, 0
    %32 = vsyncpa [#allocation18], 0
    %s33 = scalar_lea.sflag [#allocation18], 1
    %34 = vsyncpa %s33, 0
    %35 = vsyncpa [#allocation21], 0
    %s36 = scalar_lea.sflag [#allocation21], 1
    %37 = vsyncpa %s36, 0
    %38 = vsyncpa [#allocation7], 0
    %s39 = scalar_lea.sflag [#allocation7], 1
    %40 = vsyncpa %s39, 0
    %41 = vsyncpa [#allocation24], 0
    %s42 = scalar_lea.sflag [#allocation24], 1
    %43 = vsyncpa %s42, 0
    loop: start=0, step=1, limit=6
    $region2: #{_lambda_.1} parent=1 // loop_pre_header
      _
    $region3: #{_lambda_.1} parent=1 // loop_header
      %s45 = sphi 0, %s49
      %p46 = scmp.ge.s32.totalorder %s45, 6
      %s52 = sphi 0, %s64
      %s53 = sphi 0, %s60
      %s54 = sphi 0, %s52
      %s55 = sphi 0, %s53
      %s56 = sphi 0, %s54
      %s57 = sphi 0, %s55
      %s67 = sphi 0, %s69
      %s70 = sphi 0, %s67
      %s71 = sphi 0, %s70
      %s87 = sphi 0, %s71
      %s93 = sphi 0, %s95
      %s96 = sphi 0, %s93
      %s97 = sphi 0, %s96
      %s113 = sphi 0, %s97
      %s119 = sphi 0, %s121
      %s122 = sphi 0, %s119
      %s123 = sphi 0, %s122
      %s139 = sphi 0, %s123
      %s145 = sphi 0, %s147
      %s148 = sphi 0, %s145
      %s149 = sphi 0, %s148
      %s165 = sphi 0, %s149
      %s171 = sphi 0, %s173
      %s174 = sphi 0, %s171
      %s175 = sphi 0, %s174
      %s191 = sphi 0, %s175
      %s197 = sphi 0, %s199
      %s200 = sphi 0, %s197
      %s201 = sphi 0, %s200
      %s217 = sphi 0, %s201
      %s223 = sphi 0, %s225
      %s226 = sphi 0, %s223
      %s227 = sphi 0, %s226
      %s243 = sphi 0, %s227
      %s249 = sphi 0, %s251
      %s252 = sphi 0, %s249
      %s253 = sphi 0, %s252
      %s269 = sphi 0, %s253
      %s275 = sphi 0, %s277
      %s278 = sphi 0, %s275
      %s279 = sphi 0, %s278
      %s295 = sphi 0, %s279
      %s301 = sphi 0, %s303
      %s304 = sphi 0, %s301
      %s305 = sphi 0, %s304
      %s321 = sphi 0, %s305
      %s327 = sphi 0, %s329
      %s330 = sphi 0, %s327
      %s331 = sphi 0, %s330
      %s347 = sphi 0, %s331
      %s353 = sphi 0, %s355
      %s356 = sphi 0, %s353
      %s357 = sphi 0, %s356
      %s373 = sphi 0, %s357
      %s379 = sphi 0, %s381
      %s382 = sphi 0, %s379
      %s383 = sphi 0, %s382
      %s399 = sphi 0, %s383
      %s405 = sphi 0, %s407
      %s408 = sphi 0, %s405
      %s409 = sphi 0, %s408
      %s425 = sphi 0, %s409
      %s431 = sphi 0, %s433
      %s434 = sphi 0, %s431
      %s435 = sphi 0, %s434
      %s451 = sphi 0, %s435
    $region4: #{_lambda_.1} parent=1 // loop_header_branch
      %48 = sbr.rel (%p46) target = $region8
    $region5: #{_lambda_.1} parent=1 // loop_body
      %s50 = ssub.s32 %s45, 1
      %s51 = ssub.s32 %s45, 2
      %s58 = sadd.s32 1, %s53
      %p59 = scmp.ge.s32.totalorder %s58, 2
      %s60 = scalar_select %p59, 0, %s58
      %s61 = sadd.s32 1, %s52
      %s62 = scalar_select %p59, %s61, %s52
      %p63 = scmp.ge.s32.totalorder %s62, 2
      %s64 = scalar_select %p63, 0, %s62
      %s65 = ssub.s32 %s52, %s64
      %p66 = scmp.eq.s32.totalorder %s65, 0
      %s68 = sadd.s32 %s67, 1
      %s69 = scalar_select %p66, %s67, %s68
      %p72 = pneg %p66
      %p73 = scmp.eq.s32.totalorder %s45, 3
      %p74 = por %p72, %p73
      %p75 = scmp.ne.s32.totalorder %s67, %s70
      %p76 = scmp.eq.s32.totalorder %s45, 0
      %p77 = por %p75, %p76
      %p78 = scmp.ne.s32.totalorder %s67, %s70
      %p79 = scmp.eq.s32.totalorder %s50, 3
      %p80 = por %p78, %p79
      %p81 = scmp.ne.s32.totalorder %s70, %s71
      %p82 = scmp.eq.s32.totalorder %s50, 0
      %p83 = por %p81, %p82
      %p84 = scmp.ne.s32.totalorder %s70, %s71
      %p85 = scmp.eq.s32.totalorder %s51, 3
      %p86 = por %p84, %p85
      %p88 = scmp.ne.s32.totalorder %s71, %s87
      %p89 = scmp.eq.s32.totalorder %s51, 0
      %p90 = por %p88, %p89
      %s91 = ssub.s32 %s52, %s64
      %p92 = scmp.eq.s32.totalorder %s91, 0
      %s94 = sadd.s32 %s93, 1
      %s95 = scalar_select %p92, %s93, %s94
      %p98 = pneg %p92
      %p99 = scmp.eq.s32.totalorder %s45, 3
      %p100 = por %p98, %p99
      %p101 = scmp.ne.s32.totalorder %s93, %s96
      %p102 = scmp.eq.s32.totalorder %s45, 0
      %p103 = por %p101, %p102
      %p104 = scmp.ne.s32.totalorder %s93, %s96
      %p105 = scmp.eq.s32.totalorder %s50, 3
      %p106 = por %p104, %p105
      %p107 = scmp.ne.s32.totalorder %s96, %s97
      %p108 = scmp.eq.s32.totalorder %s50, 0
      %p109 = por %p107, %p108
      %p110 = scmp.ne.s32.totalorder %s96, %s97
      %p111 = scmp.eq.s32.totalorder %s51, 3
      %p112 = por %p110, %p111
      %p114 = scmp.ne.s32.totalorder %s97, %s113
      %p115 = scmp.eq.s32.totalorder %s51, 0
      %p116 = por %p114, %p115
      %s117 = ssub.s32 %s53, %s60
      %p118 = scmp.eq.s32.totalorder %s117, 0
      %s120 = sadd.s32 %s119, 1
      %s121 = scalar_select %p118, %s119, %s120
      %p124 = pneg %p118
      %p125 = scmp.eq.s32.totalorder %s45, 3
      %p126 = por %p124, %p125
      %p127 = scmp.ne.s32.totalorder %s119, %s122
      %p128 = scmp.eq.s32.totalorder %s45, 0
      %p129 = por %p127, %p128
      %p130 = scmp.ne.s32.totalorder %s119, %s122
      %p131 = scmp.eq.s32.totalorder %s50, 3
      %p132 = por %p130, %p131
      %p133 = scmp.ne.s32.totalorder %s122, %s123
      %p134 = scmp.eq.s32.totalorder %s50, 0
      %p135 = por %p133, %p134
      %p136 = scmp.ne.s32.totalorder %s122, %s123
      %p137 = scmp.eq.s32.totalorder %s51, 3
      %p138 = por %p136, %p137
      %p140 = scmp.ne.s32.totalorder %s123, %s139
      %p141 = scmp.eq.s32.totalorder %s51, 0
      %p142 = por %p140, %p141
      %s143 = ssub.s32 %s53, %s60
      %p144 = scmp.eq.s32.totalorder %s143, 0
      %s146 = sadd.s32 %s145, 1
      %s147 = scalar_select %p144, %s145, %s146
      %p150 = pneg %p144
      %p151 = scmp.eq.s32.totalorder %s45, 3
      %p152 = por %p150, %p151
      %p153 = scmp.ne.s32.totalorder %s145, %s148
      %p154 = scmp.eq.s32.totalorder %s45, 0
      %p155 = por %p153, %p154
      %p156 = scmp.ne.s32.totalorder %s145, %s148
      %p157 = scmp.eq.s32.totalorder %s50, 3
      %p158 = por %p156, %p157
      %p159 = scmp.ne.s32.totalorder %s148, %s149
      %p160 = scmp.eq.s32.totalorder %s50, 0
      %p161 = por %p159, %p160
      %p162 = scmp.ne.s32.totalorder %s148, %s149
      %p163 = scmp.eq.s32.totalorder %s51, 3
      %p164 = por %p162, %p163
      %p166 = scmp.ne.s32.totalorder %s149, %s165
      %p167 = scmp.eq.s32.totalorder %s51, 0
      %p168 = por %p166, %p167
      %s169 = ssub.s32 %s53, %s60
      %p170 = scmp.eq.s32.totalorder %s169, 0
      %s172 = sadd.s32 %s171, 1
      %s173 = scalar_select %p170, %s171, %s172
      %p176 = pneg %p170
      %p177 = scmp.eq.s32.totalorder %s45, 3
      %p178 = por %p176, %p177
      %p179 = scmp.ne.s32.totalorder %s171, %s174
      %p180 = scmp.eq.s32.totalorder %s45, 0
      %p181 = por %p179, %p180
      %p182 = scmp.ne.s32.totalorder %s171, %s174
      %p183 = scmp.eq.s32.totalorder %s50, 3
      %p184 = por %p182, %p183
      %p185 = scmp.ne.s32.totalorder %s174, %s175
      %p186 = scmp.eq.s32.totalorder %s50, 0
      %p187 = por %p185, %p186
      %p188 = scmp.ne.s32.totalorder %s174, %s175
      %p189 = scmp.eq.s32.totalorder %s51, 3
      %p190 = por %p188, %p189
      %p192 = scmp.ne.s32.totalorder %s175, %s191
      %p193 = scmp.eq.s32.totalorder %s51, 0
      %p194 = por %p192, %p193
      %s195 = ssub.s32 %s53, %s60
      %p196 = scmp.eq.s32.totalorder %s195, 0
      %s198 = sadd.s32 %s197, 1
      %s199 = scalar_select %p196, %s197, %s198
      %p202 = pneg %p196
      %p203 = scmp.eq.s32.totalorder %s45, 3
      %p204 = por %p202, %p203
      %p205 = scmp.ne.s32.totalorder %s197, %s200
      %p206 = scmp.eq.s32.totalorder %s45, 0
      %p207 = por %p205, %p206
      %p208 = scmp.ne.s32.totalorder %s197, %s200
      %p209 = scmp.eq.s32.totalorder %s50, 3
      %p210 = por %p208, %p209
      %p211 = scmp.ne.s32.totalorder %s200, %s201
      %p212 = scmp.eq.s32.totalorder %s50, 0
      %p213 = por %p211, %p212
      %p214 = scmp.ne.s32.totalorder %s200, %s201
      %p215 = scmp.eq.s32.totalorder %s51, 3
      %p216 = por %p214, %p215
      %p218 = scmp.ne.s32.totalorder %s201, %s217
      %p219 = scmp.eq.s32.totalorder %s51, 0
      %p220 = por %p218, %p219
      %s221 = ssub.s32 %s53, %s60
      %p222 = scmp.eq.s32.totalorder %s221, 0
      %s224 = sadd.s32 %s223, 1
      %s225 = scalar_select %p222, %s223, %s224
      %p228 = pneg %p222
      %p229 = scmp.eq.s32.totalorder %s45, 3
      %p230 = por %p228, %p229
      %p231 = scmp.ne.s32.totalorder %s223, %s226
      %p232 = scmp.eq.s32.totalorder %s45, 0
      %p233 = por %p231, %p232
      %p234 = scmp.ne.s32.totalorder %s223, %s226
      %p235 = scmp.eq.s32.totalorder %s50, 3
      %p236 = por %p234, %p235
      %p237 = scmp.ne.s32.totalorder %s226, %s227
      %p238 = scmp.eq.s32.totalorder %s50, 0
      %p239 = por %p237, %p238
      %p240 = scmp.ne.s32.totalorder %s226, %s227
      %p241 = scmp.eq.s32.totalorder %s51, 3
      %p242 = por %p240, %p241
      %p244 = scmp.ne.s32.totalorder %s227, %s243
      %p245 = scmp.eq.s32.totalorder %s51, 0
      %p246 = por %p244, %p245
      %s247 = ssub.s32 %s53, %s60
      %p248 = scmp.eq.s32.totalorder %s247, 0
      %s250 = sadd.s32 %s249, 1
      %s251 = scalar_select %p248, %s249, %s250
      %p254 = pneg %p248
      %p255 = scmp.eq.s32.totalorder %s45, 3
      %p256 = por %p254, %p255
      %p257 = scmp.ne.s32.totalorder %s249, %s252
      %p258 = scmp.eq.s32.totalorder %s45, 0
      %p259 = por %p257, %p258
      %p260 = scmp.ne.s32.totalorder %s249, %s252
      %p261 = scmp.eq.s32.totalorder %s50, 3
      %p262 = por %p260, %p261
      %p263 = scmp.ne.s32.totalorder %s252, %s253
      %p264 = scmp.eq.s32.totalorder %s50, 0
      %p265 = por %p263, %p264
      %p266 = scmp.ne.s32.totalorder %s252, %s253
      %p267 = scmp.eq.s32.totalorder %s51, 3
      %p268 = por %p266, %p267
      %p270 = scmp.ne.s32.totalorder %s253, %s269
      %p271 = scmp.eq.s32.totalorder %s51, 0
      %p272 = por %p270, %p271
      %s273 = ssub.s32 %s53, %s60
      %p274 = scmp.eq.s32.totalorder %s273, 0
      %s276 = sadd.s32 %s275, 1
      %s277 = scalar_select %p274, %s275, %s276
      %p280 = pneg %p274
      %p281 = scmp.eq.s32.totalorder %s45, 3
      %p282 = por %p280, %p281
      %p283 = scmp.ne.s32.totalorder %s275, %s278
      %p284 = scmp.eq.s32.totalorder %s45, 0
      %p285 = por %p283, %p284
      %p286 = scmp.ne.s32.totalorder %s275, %s278
      %p287 = scmp.eq.s32.totalorder %s50, 3
      %p288 = por %p286, %p287
      %p289 = scmp.ne.s32.totalorder %s278, %s279
      %p290 = scmp.eq.s32.totalorder %s50, 0
      %p291 = por %p289, %p290
      %p292 = scmp.ne.s32.totalorder %s278, %s279
      %p293 = scmp.eq.s32.totalorder %s51, 3
      %p294 = por %p292, %p293
      %p296 = scmp.ne.s32.totalorder %s279, %s295
      %p297 = scmp.eq.s32.totalorder %s51, 0
      %p298 = por %p296, %p297
      %s299 = ssub.s32 %s53, %s60
      %p300 = scmp.eq.s32.totalorder %s299, 0
      %s302 = sadd.s32 %s301, 1
      %s303 = scalar_select %p300, %s301, %s302
      %p306 = pneg %p300
      %p307 = scmp.eq.s32.totalorder %s45, 3
      %p308 = por %p306, %p307
      %p309 = scmp.ne.s32.totalorder %s301, %s304
      %p310 = scmp.eq.s32.totalorder %s45, 0
      %p311 = por %p309, %p310
      %p312 = scmp.ne.s32.totalorder %s301, %s304
      %p313 = scmp.eq.s32.totalorder %s50, 3
      %p314 = por %p312, %p313
      %p315 = scmp.ne.s32.totalorder %s304, %s305
      %p316 = scmp.eq.s32.totalorder %s50, 0
      %p317 = por %p315, %p316
      %p318 = scmp.ne.s32.totalorder %s304, %s305
      %p319 = scmp.eq.s32.totalorder %s51, 3
      %p320 = por %p318, %p319
      %p322 = scmp.ne.s32.totalorder %s305, %s321
      %p323 = scmp.eq.s32.totalorder %s51, 0
      %p324 = por %p322, %p323
      %s325 = ssub.s32 %s53, %s60
      %p326 = scmp.eq.s32.totalorder %s325, 0
      %s328 = sadd.s32 %s327, 1
      %s329 = scalar_select %p326, %s327, %s328
      %p332 = pneg %p326
      %p333 = scmp.eq.s32.totalorder %s45, 3
      %p334 = por %p332, %p333
      %p335 = scmp.ne.s32.totalorder %s327, %s330
      %p336 = scmp.eq.s32.totalorder %s45, 0
      %p337 = por %p335, %p336
      %p338 = scmp.ne.s32.totalorder %s327, %s330
      %p339 = scmp.eq.s32.totalorder %s50, 3
      %p340 = por %p338, %p339
      %p341 = scmp.ne.s32.totalorder %s330, %s331
      %p342 = scmp.eq.s32.totalorder %s50, 0
      %p343 = por %p341, %p342
      %p344 = scmp.ne.s32.totalorder %s330, %s331
      %p345 = scmp.eq.s32.totalorder %s51, 3
      %p346 = por %p344, %p345
      %p348 = scmp.ne.s32.totalorder %s331, %s347
      %p349 = scmp.eq.s32.totalorder %s51, 0
      %p350 = por %p348, %p349
      %s351 = ssub.s32 %s53, %s60
      %p352 = scmp.eq.s32.totalorder %s351, 0
      %s354 = sadd.s32 %s353, 1
      %s355 = scalar_select %p352, %s353, %s354
      %p358 = pneg %p352
      %p359 = scmp.eq.s32.totalorder %s45, 3
      %p360 = por %p358, %p359
      %p361 = scmp.ne.s32.totalorder %s353, %s356
      %p362 = scmp.eq.s32.totalorder %s45, 0
      %p363 = por %p361, %p362
      %p364 = scmp.ne.s32.totalorder %s353, %s356
      %p365 = scmp.eq.s32.totalorder %s50, 3
      %p366 = por %p364, %p365
      %p367 = scmp.ne.s32.totalorder %s356, %s357
      %p368 = scmp.eq.s32.totalorder %s50, 0
      %p369 = por %p367, %p368
      %p370 = scmp.ne.s32.totalorder %s356, %s357
      %p371 = scmp.eq.s32.totalorder %s51, 3
      %p372 = por %p370, %p371
      %p374 = scmp.ne.s32.totalorder %s357, %s373
      %p375 = scmp.eq.s32.totalorder %s51, 0
      %p376 = por %p374, %p375
      %s377 = ssub.s32 %s52, %s64
      %p378 = scmp.eq.s32.totalorder %s377, 0
      %s380 = sadd.s32 %s379, 1
      %s381 = scalar_select %p378, %s379, %s380
      %p384 = pneg %p378
      %p385 = scmp.eq.s32.totalorder %s45, 3
      %p386 = por %p384, %p385
      %p387 = scmp.ne.s32.totalorder %s379, %s382
      %p388 = scmp.eq.s32.totalorder %s45, 0
      %p389 = por %p387, %p388
      %p390 = scmp.ne.s32.totalorder %s379, %s382
      %p391 = scmp.eq.s32.totalorder %s50, 3
      %p392 = por %p390, %p391
      %p393 = scmp.ne.s32.totalorder %s382, %s383
      %p394 = scmp.eq.s32.totalorder %s50, 0
      %p395 = por %p393, %p394
      %p396 = scmp.ne.s32.totalorder %s382, %s383
      %p397 = scmp.eq.s32.totalorder %s51, 3
      %p398 = por %p396, %p397
      %p400 = scmp.ne.s32.totalorder %s383, %s399
      %p401 = scmp.eq.s32.totalorder %s51, 0
      %p402 = por %p400, %p401
      %s403 = ssub.s32 %s52, %s64
      %p404 = scmp.eq.s32.totalorder %s403, 0
      %s406 = sadd.s32 %s405, 1
      %s407 = scalar_select %p404, %s405, %s406
      %p410 = pneg %p404
      %p411 = scmp.eq.s32.totalorder %s45, 3
      %p412 = por %p410, %p411
      %p413 = scmp.ne.s32.totalorder %s405, %s408
      %p414 = scmp.eq.s32.totalorder %s45, 0
      %p415 = por %p413, %p414
      %p416 = scmp.ne.s32.totalorder %s405, %s408
      %p417 = scmp.eq.s32.totalorder %s50, 3
      %p418 = por %p416, %p417
      %p419 = scmp.ne.s32.totalorder %s408, %s409
      %p420 = scmp.eq.s32.totalorder %s50, 0
      %p421 = por %p419, %p420
      %p422 = scmp.ne.s32.totalorder %s408, %s409
      %p423 = scmp.eq.s32.totalorder %s51, 3
      %p424 = por %p422, %p423
      %p426 = scmp.ne.s32.totalorder %s409, %s425
      %p427 = scmp.eq.s32.totalorder %s51, 0
      %p428 = por %p426, %p427
      %s429 = ssub.s32 %s52, %s64
      %p430 = scmp.eq.s32.totalorder %s429, 0
      %s432 = sadd.s32 %s431, 1
      %s433 = scalar_select %p430, %s431, %s432
      %p436 = pneg %p430
      %p437 = scmp.eq.s32.totalorder %s45, 3
      %p438 = por %p436, %p437
      %p439 = scmp.ne.s32.totalorder %s431, %s434
      %p440 = scmp.eq.s32.totalorder %s45, 0
      %p441 = por %p439, %p440
      %p442 = scmp.ne.s32.totalorder %s431, %s434
      %p443 = scmp.eq.s32.totalorder %s50, 3
      %p444 = por %p442, %p443
      %p445 = scmp.ne.s32.totalorder %s434, %s435
      %p446 = scmp.eq.s32.totalorder %s50, 0
      %p447 = por %p445, %p446
      %p448 = scmp.ne.s32.totalorder %s434, %s435
      %p449 = scmp.eq.s32.totalorder %s51, 3
      %p450 = por %p448, %p449
      %p452 = scmp.ne.s32.totalorder %s435, %s451
      %p453 = scmp.eq.s32.totalorder %s51, 0
      %p454 = por %p452, %p453
      %p455 = scmp.le.s32.totalorder 1, %s45
      %p456 = scmp.lt.s32.totalorder %s45, 5
      %p457 = pnand %p455, %p456
      %p458 = pneg %p457
      // Predicated region
      $region9: #{_lambda_.1} parent=5 // pred_check
        _
      $region10: #{_lambda_.1} parent=5 // pred_check_branch
        %460 = sbr.rel (%p457) target = $region12
      $region11: #{_lambda_.1} parent=5 // pred_region
        %s461 = ssub.s32 %s45, 1
      $region12: #{_lambda_.1} parent=5 // pred_fallthru
        _
      %p462 = scmp.lt.s32.totalorder %s45, 4
      // Predicated region
      $region13: #{_lambda_.1} parent=5 // pred_check
        %p463 = pneg %p462
      $region14: #{_lambda_.1} parent=5 // pred_check_branch
        %465 = sbr.rel (%p463) target = $region16
      $region15: #{_lambda_.1} parent=5 // pred_region
        // Predicated region
        $region17: #{_lambda_.1} parent=15 // pred_check
          %p466 = pneg %p77
        $region18: #{_lambda_.1} parent=15 // pred_check_branch
          %468 = sbr.rel (%p466) target = $region20
        $region19: #{_lambda_.1} parent=15 // pred_region
          %s469 = sand.u32 %s67, 1
          %s470 = scalar_lea.sflag [#allocation6], %s469
          %s471 = sand.u32 %s67, 1
          %s472 = scalar_lea.vmem [#allocation5], %s471
          %s474 = ssub.s32 16, 16
          %475 = vsyncadd %s470, %s474
          %s476 = smul.addr %s52, 16
          %s477 = scalar_lea.hbm %s0, %s476
          %s479 = sshll.u32 %s472, 4
          %s480 = int_to_ptr.vmem [resolvable:$true] %s479
          %482 = dma.hbm_to_vmem [thread:$0]  %s477, 16, %s480, %s470
        $region20: #{_lambda_.1} parent=15 // pred_fallthru
          _
        // Predicated region
        $region21: #{_lambda_.1} parent=15 // pred_check
          %p483 = pneg %p103
        $region22: #{_lambda_.1} parent=15 // pred_check_branch
          %485 = sbr.rel (%p483) target = $region24
        $region23: #{_lambda_.1} parent=15 // pred_region
          %s486 = sand.u32 %s45, 1
          %s487 = scalar_lea.sflag [#allocation9], %s486
          %s488 = sand.u32 %s93, 1
          %s489 = smul.addr %s488, 8
          %s490 = scalar_lea.vmem [#allocation8], %s489
          %s492 = ssub.s32 128, 128
          %493 = vsyncadd %s487, %s492
          %s494 = smul.addr %s52, 128
          %s495 = scalar_lea.hbm %s1, %s494
          %s497 = sshll.u32 %s490, 4
          %s498 = int_to_ptr.vmem [resolvable:$true] %s497
          %500 = dma.hbm_to_vmem [thread:$0]  %s495, 128, %s498, %s487
        $region24: #{_lambda_.1} parent=15 // pred_fallthru
          _
        // Predicated region
        $region25: #{_lambda_.1} parent=15 // pred_check
          %p501 = pneg %p129
        $region26: #{_lambda_.1} parent=15 // pred_check_branch
          %503 = sbr.rel (%p501) target = $region28
        $region27: #{_lambda_.1} parent=15 // pred_region
          %s504 = sand.u32 %s45, 1
          %s505 = scalar_lea.sflag [#allocation9], %s504
          %s506 = sand.u32 %s119, 1
          %s507 = smul.addr %s506, 64
          %s508 = scalar_lea.vmem [#allocation10], %s507
          %s510 = ssub.s32 1024, 1024
          %511 = vsyncadd %s505, %s510
          %s512 = smul.addr %s53, 8
          %s513 = smul.addr %s512, 128
          %s514 = scalar_lea.hbm %s2, %s513
          %s515 = sshll.u32 %s508, 4
          %s516 = int_to_ptr.vmem [resolvable:$true] %s515
          %521 = dma.hbm_to_vmem [thread:$0]  %s514, 1024, %s516, %s505, 128, 128, 8
        $region28: #{_lambda_.1} parent=15 // pred_fallthru
          _
        // Predicated region
        $region29: #{_lambda_.1} parent=15 // pred_check
          %p522 = pneg %p155
        $region30: #{_lambda_.1} parent=15 // pred_check_branch
          %524 = sbr.rel (%p522) target = $region32
        $region31: #{_lambda_.1} parent=15 // pred_region
          %s525 = sand.u32 %s45, 1
          %s526 = scalar_lea.sflag [#allocation12], %s525
          %s527 = sand.u32 %s145, 1
          %s528 = smul.addr %s527, 16
          %s529 = scalar_lea.vmem [#allocation11], %s528
          %s531 = ssub.s32 256, 256
          %532 = vsyncadd %s526, %s531
          %s533 = smul.addr %s53, 2
          %s534 = smul.addr %s533, 128
          %s535 = scalar_lea.hbm %s3, %s534
          %s536 = sshll.u32 %s529, 4
          %s537 = int_to_ptr.vmem [resolvable:$true] %s536
          %542 = dma.hbm_to_vmem [thread:$0]  %s535, 256, %s537, %s526, 128, 128, 8
        $region32: #{_lambda_.1} parent=15 // pred_fallthru
          _
        // Predicated region
        $region33: #{_lambda_.1} parent=15 // pred_check
          %p543 = pneg %p181
        $region34: #{_lambda_.1} parent=15 // pred_check_branch
          %545 = sbr.rel (%p543) target = $region36
        $region35: #{_lambda_.1} parent=15 // pred_region
          %s546 = sand.u32 %s45, 1
          %s547 = scalar_lea.sflag [#allocation12], %s546
          %s548 = sand.u32 %s171, 1
          %s549 = smul.addr %s548, 192
          %s550 = scalar_lea.vmem [#allocation13], %s549
          %s552 = ssub.s32 3072, 3072
          %553 = vsyncadd %s547, %s552
          %s554 = smul.addr %s53, 24
          %s555 = smul.addr %s554, 128
          %s556 = scalar_lea.hbm %s4, %s555
          %s557 = sshll.u32 %s550, 4
          %s558 = int_to_ptr.vmem [resolvable:$true] %s557
          %563 = dma.hbm_to_vmem [thread:$0]  %s556, 3072, %s558, %s547, 128, 128, 8
        $region36: #{_lambda_.1} parent=15 // pred_fallthru
          _
        // Predicated region
        $region37: #{_lambda_.1} parent=15 // pred_check
          %p564 = pneg %p207
        $region38: #{_lambda_.1} parent=15 // pred_check_branch
          %566 = sbr.rel (%p564) target = $region40
        $region39: #{_lambda_.1} parent=15 // pred_region
          %s567 = sand.u32 %s45, 1
          %s568 = scalar_lea.sflag [#allocation15], %s567
          %s569 = sand.u32 %s197, 1
          %s570 = smul.addr %s569, 192
          %s571 = scalar_lea.vmem [#allocation14], %s570
          %s573 = ssub.s32 3072, 3072
          %574 = vsyncadd %s568, %s573
          %s575 = smul.addr %s53, 24
          %s576 = smul.addr %s575, 128
          %s577 = scalar_lea.hbm %s5, %s576
          %s578 = sshll.u32 %s571, 4
          %s579 = int_to_ptr.vmem [resolvable:$true] %s578
          %584 = dma.hbm_to_vmem [thread:$0]  %s577, 3072, %s579, %s568, 128, 128, 8
        $region40: #{_lambda_.1} parent=15 // pred_fallthru
          _
        // Predicated region
        $region41: #{_lambda_.1} parent=15 // pred_check
          %p585 = pneg %p233
        $region42: #{_lambda_.1} parent=15 // pred_check_branch
          %587 = sbr.rel (%p585) target = $region44
        $region43: #{_lambda_.1} parent=15 // pred_region
          %s588 = sand.u32 %s45, 1
          %s589 = scalar_lea.sflag [#allocation15], %s588
          %s590 = sand.u32 %s223, 1
          %s591 = smul.addr %s590, 96
          %s592 = scalar_lea.vmem [#allocation16], %s591
          %s594 = ssub.s32 1536, 1536
          %595 = vsyncadd %s589, %s594
          %s596 = smul.addr %s53, 12
          %s597 = smul.addr %s596, 128
          %s598 = scalar_lea.hbm %s6, %s597
          %s599 = sshll.u32 %s592, 4
          %s600 = int_to_ptr.vmem [resolvable:$true] %s599
          %605 = dma.hbm_to_vmem [thread:$0]  %s598, 1536, %s600, %s589, 128, 128, 8
        $region44: #{_lambda_.1} parent=15 // pred_fallthru
          _
        // Predicated region
        $region45: #{_lambda_.1} parent=15 // pred_check
          %p606 = pneg %p259
        $region46: #{_lambda_.1} parent=15 // pred_check_branch
          %608 = sbr.rel (%p606) target = $region48
        $region47: #{_lambda_.1} parent=15 // pred_region
          %s609 = sand.u32 %s45, 1
          %s610 = scalar_lea.sflag [#allocation18], %s609
          %s611 = sand.u32 %s249, 1
          %s612 = smul.addr %s611, 96
          %s613 = scalar_lea.vmem [#allocation17], %s612
          %s615 = ssub.s32 1536, 1536
          %616 = vsyncadd %s610, %s615
          %s617 = smul.addr %s53, 12
          %s618 = smul.addr %s617, 128
          %s619 = scalar_lea.hbm %s7, %s618
          %s620 = sshll.u32 %s613, 4
          %s621 = int_to_ptr.vmem [resolvable:$true] %s620
          %626 = dma.hbm_to_vmem [thread:$0]  %s619, 1536, %s621, %s610, 128, 128, 8
        $region48: #{_lambda_.1} parent=15 // pred_fallthru
          _
        // Predicated region
        $region49: #{_lambda_.1} parent=15 // pred_check
          %p627 = pneg %p285
        $region50: #{_lambda_.1} parent=15 // pred_check_branch
          %629 = sbr.rel (%p627) target = $region52
        $region51: #{_lambda_.1} parent=15 // pred_region
          %s630 = sand.u32 %s45, 1
          %s631 = scalar_lea.sflag [#allocation18], %s630
          %s632 = sand.u32 %s275, 1
          %s633 = smul.addr %s632, 16
          %s634 = scalar_lea.vmem [#allocation19], %s633
          %s636 = ssub.s32 256, 256
          %637 = vsyncadd %s631, %s636
          %s638 = smul.addr %s53, 2
          %s639 = smul.addr %s638, 128
          %s640 = scalar_lea.hbm %s8, %s639
          %s641 = sshll.u32 %s634, 4
          %s642 = int_to_ptr.vmem [resolvable:$true] %s641
          %647 = dma.hbm_to_vmem [thread:$0]  %s640, 256, %s642, %s631, 128, 128, 8
        $region52: #{_lambda_.1} parent=15 // pred_fallthru
          _
        // Predicated region
        $region53: #{_lambda_.1} parent=15 // pred_check
          %p648 = pneg %p311
        $region54: #{_lambda_.1} parent=15 // pred_check_branch
          %650 = sbr.rel (%p648) target = $region56
        $region55: #{_lambda_.1} parent=15 // pred_region
          %s651 = sand.u32 %s301, 1
          %s652 = scalar_lea.sflag [#allocation21], %s651
          %s653 = sand.u32 %s301, 1
          %s654 = smul.addr %s653, 16
          %s655 = scalar_lea.vmem [#allocation20], %s654
          %s657 = ssub.s32 256, 256
          %658 = vsyncadd %s652, %s657
          %s659 = smul.addr %s53, 2
          %s660 = smul.addr %s659, 128
          %s661 = scalar_lea.hbm %s9, %s660
          %s662 = sshll.u32 %s655, 4
          %s663 = int_to_ptr.vmem [resolvable:$true] %s662
          %668 = dma.hbm_to_vmem [thread:$0]  %s661, 256, %s663, %s652, 128, 128, 8
        $region56: #{_lambda_.1} parent=15 // pred_fallthru
          _
        // Predicated region
        $region57: #{_lambda_.1} parent=15 // pred_check
          %p669 = pneg %p337
        $region58: #{_lambda_.1} parent=15 // pred_check_branch
          %671 = sbr.rel (%p669) target = $region60
        $region59: #{_lambda_.1} parent=15 // pred_region
          %p672 = scmp.lt.s32.totalorder %s53, 1
          %s673 = scalar_select %p672, %s53, 1
          %s674 = smul.addr %s673, 2
          %s675 = scalar_lea.vmem %s10, %s674
        $region60: #{_lambda_.1} parent=15 // pred_fallthru
          _
        // Predicated region
        $region61: #{_lambda_.1} parent=15 // pred_check
          %p676 = pneg %p363
        $region62: #{_lambda_.1} parent=15 // pred_check_branch
          %678 = sbr.rel (%p676) target = $region64
        $region63: #{_lambda_.1} parent=15 // pred_region
          %p679 = scmp.lt.s32.totalorder %s53, 1
          %s680 = scalar_select %p679, %s53, 1
          %s681 = smul.addr %s680, 2
          %s682 = scalar_lea.vmem %s11, %s681
        $region64: #{_lambda_.1} parent=15 // pred_fallthru
          _
      $region16: #{_lambda_.1} parent=5 // pred_fallthru
        _
      %p683 = scmp.le.s32.totalorder 1, %s45
      %p684 = scmp.lt.s32.totalorder %s45, 5
      %p685 = pnand %p683, %p684
      %p686 = pneg %p685
      // Predicated region
      $region65: #{_lambda_.1} parent=5 // pred_check
        _
      $region66: #{_lambda_.1} parent=5 // pred_check_branch
        %688 = sbr.rel (%p685) target = $region68
      $region67: #{_lambda_.1} parent=5 // pred_region
        %s689 = ssub.s32 %s45, 1
        %s690 = sand.u32 %s70, 1
        %s691 = scalar_lea.sflag [#allocation6], %s690
        %s692 = sand.u32 %s70, 1
        %s693 = scalar_lea.vmem [#allocation5], %s692
        // Predicated region
        $region69: #{_lambda_.1} parent=67 // pred_check
          %p694 = pneg %p83
        $region70: #{_lambda_.1} parent=67 // pred_check_branch
          %696 = sbr.rel (%p694) target = $region72
        $region71: #{_lambda_.1} parent=67 // pred_region
          %697 = dma.done %s691, 16
        $region72: #{_lambda_.1} parent=67 // pred_fallthru
          _
        %s698 = sand.u32 %s50, 1
        %s699 = scalar_lea.sflag [#allocation9], %s698
        %s700 = sand.u32 %s96, 1
        %s701 = smul.addr %s700, 8
        %s702 = scalar_lea.vmem [#allocation8], %s701
        // Predicated region
        $region73: #{_lambda_.1} parent=67 // pred_check
          %p703 = pneg %p109
        $region74: #{_lambda_.1} parent=67 // pred_check_branch
          %705 = sbr.rel (%p703) target = $region76
        $region75: #{_lambda_.1} parent=67 // pred_region
          %706 = dma.done %s699, 128
        $region76: #{_lambda_.1} parent=67 // pred_fallthru
          _
        %s707 = sand.u32 %s50, 1
        %s708 = scalar_lea.sflag [#allocation9], %s707
        %s709 = sand.u32 %s122, 1
        %s710 = smul.addr %s709, 64
        %s711 = scalar_lea.vmem [#allocation10], %s710
        // Predicated region
        $region77: #{_lambda_.1} parent=67 // pred_check
          %p712 = pneg %p135
        $region78: #{_lambda_.1} parent=67 // pred_check_branch
          %714 = sbr.rel (%p712) target = $region80
        $region79: #{_lambda_.1} parent=67 // pred_region
          %715 = dma.done %s708, 1024
        $region80: #{_lambda_.1} parent=67 // pred_fallthru
          _
        %s716 = sand.u32 %s50, 1
        %s717 = scalar_lea.sflag [#allocation12], %s716
        %s718 = sand.u32 %s148, 1
        %s719 = smul.addr %s718, 16
        %s720 = scalar_lea.vmem [#allocation11], %s719
        // Predicated region
        $region81: #{_lambda_.1} parent=67 // pred_check
          %p721 = pneg %p161
        $region82: #{_lambda_.1} parent=67 // pred_check_branch
          %723 = sbr.rel (%p721) target = $region84
        $region83: #{_lambda_.1} parent=67 // pred_region
          %724 = dma.done %s717, 256
        $region84: #{_lambda_.1} parent=67 // pred_fallthru
          _
        %s725 = sand.u32 %s50, 1
        %s726 = scalar_lea.sflag [#allocation12], %s725
        %s727 = sand.u32 %s174, 1
        %s728 = smul.addr %s727, 192
        %s729 = scalar_lea.vmem [#allocation13], %s728
        // Predicated region
        $region85: #{_lambda_.1} parent=67 // pred_check
          %p730 = pneg %p187
        $region86: #{_lambda_.1} parent=67 // pred_check_branch
          %732 = sbr.rel (%p730) target = $region88
        $region87: #{_lambda_.1} parent=67 // pred_region
          %733 = dma.done %s726, 3072
        $region88: #{_lambda_.1} parent=67 // pred_fallthru
          _
        %s734 = sand.u32 %s50, 1
        %s735 = scalar_lea.sflag [#allocation15], %s734
        %s736 = sand.u32 %s200, 1
        %s737 = smul.addr %s736, 192
        %s738 = scalar_lea.vmem [#allocation14], %s737
        // Predicated region
        $region89: #{_lambda_.1} parent=67 // pred_check
          %p739 = pneg %p213
        $region90: #{_lambda_.1} parent=67 // pred_check_branch
          %741 = sbr.rel (%p739) target = $region92
        $region91: #{_lambda_.1} parent=67 // pred_region
          %742 = dma.done %s735, 3072
        $region92: #{_lambda_.1} parent=67 // pred_fallthru
          _
        %s743 = sand.u32 %s50, 1
        %s744 = scalar_lea.sflag [#allocation15], %s743
        %s745 = sand.u32 %s226, 1
        %s746 = smul.addr %s745, 96
        %s747 = scalar_lea.vmem [#allocation16], %s746
        // Predicated region
        $region93: #{_lambda_.1} parent=67 // pred_check
          %p748 = pneg %p239
        $region94: #{_lambda_.1} parent=67 // pred_check_branch
          %750 = sbr.rel (%p748) target = $region96
        $region95: #{_lambda_.1} parent=67 // pred_region
          %751 = dma.done %s744, 1536
        $region96: #{_lambda_.1} parent=67 // pred_fallthru
          _
        %s752 = sand.u32 %s50, 1
        %s753 = scalar_lea.sflag [#allocation18], %s752
        %s754 = sand.u32 %s252, 1
        %s755 = smul.addr %s754, 96
        %s756 = scalar_lea.vmem [#allocation17], %s755
        // Predicated region
        $region97: #{_lambda_.1} parent=67 // pred_check
          %p757 = pneg %p265
        $region98: #{_lambda_.1} parent=67 // pred_check_branch
          %759 = sbr.rel (%p757) target = $region100
        $region99: #{_lambda_.1} parent=67 // pred_region
          %760 = dma.done %s753, 1536
        $region100: #{_lambda_.1} parent=67 // pred_fallthru
          _
        %s761 = sand.u32 %s50, 1
        %s762 = scalar_lea.sflag [#allocation18], %s761
        %s763 = sand.u32 %s278, 1
        %s764 = smul.addr %s763, 16
        %s765 = scalar_lea.vmem [#allocation19], %s764
        // Predicated region
        $region101: #{_lambda_.1} parent=67 // pred_check
          %p766 = pneg %p291
        $region102: #{_lambda_.1} parent=67 // pred_check_branch
          %768 = sbr.rel (%p766) target = $region104
        $region103: #{_lambda_.1} parent=67 // pred_region
          %769 = dma.done %s762, 256
        $region104: #{_lambda_.1} parent=67 // pred_fallthru
          _
        %s770 = sand.u32 %s304, 1
        %s771 = scalar_lea.sflag [#allocation21], %s770
        %s772 = sand.u32 %s304, 1
        %s773 = smul.addr %s772, 16
        %s774 = scalar_lea.vmem [#allocation20], %s773
        // Predicated region
        $region105: #{_lambda_.1} parent=67 // pred_check
          %p775 = pneg %p317
        $region106: #{_lambda_.1} parent=67 // pred_check_branch
          %777 = sbr.rel (%p775) target = $region108
        $region107: #{_lambda_.1} parent=67 // pred_region
          %778 = dma.done %s771, 256
        $region108: #{_lambda_.1} parent=67 // pred_fallthru
          _
        %s779 = sand.u32 %s70, 1
        %s780 = scalar_lea.sflag [#allocation6], %s779
        %s781 = sand.u32 %s70, 1
        %s782 = scalar_lea.vmem [#allocation5], %s781
        %p783 = pneg %p83
        %p784 = pneg %p80
        %s785 = sand.u32 %s50, 1
        %s786 = scalar_lea.sflag [#allocation9], %s785
        %s787 = sand.u32 %s96, 1
        %s788 = smul.addr %s787, 8
        %s789 = scalar_lea.vmem [#allocation8], %s788
        %p790 = pneg %p109
        %p791 = pneg %p106
        %s792 = sand.u32 %s50, 1
        %s793 = scalar_lea.sflag [#allocation9], %s792
        %s794 = sand.u32 %s122, 1
        %s795 = smul.addr %s794, 64
        %s796 = scalar_lea.vmem [#allocation10], %s795
        %p797 = pneg %p135
        %p798 = pneg %p132
        %s799 = sand.u32 %s50, 1
        %s800 = scalar_lea.sflag [#allocation12], %s799
        %s801 = sand.u32 %s148, 1
        %s802 = smul.addr %s801, 16
        %s803 = scalar_lea.vmem [#allocation11], %s802
        %p804 = pneg %p161
        %p805 = pneg %p158
        %s806 = sand.u32 %s50, 1
        %s807 = scalar_lea.sflag [#allocation12], %s806
        %s808 = sand.u32 %s174, 1
        %s809 = smul.addr %s808, 192
        %s810 = scalar_lea.vmem [#allocation13], %s809
        %p811 = pneg %p187
        %p812 = pneg %p184
        %s813 = sand.u32 %s50, 1
        %s814 = scalar_lea.sflag [#allocation15], %s813
        %s815 = sand.u32 %s200, 1
        %s816 = smul.addr %s815, 192
        %s817 = scalar_lea.vmem [#allocation14], %s816
        %p818 = pneg %p213
        %p819 = pneg %p210
        %s820 = sand.u32 %s50, 1
        %s821 = scalar_lea.sflag [#allocation15], %s820
        %s822 = sand.u32 %s226, 1
        %s823 = smul.addr %s822, 96
        %s824 = scalar_lea.vmem [#allocation16], %s823
        %p825 = pneg %p239
        %p826 = pneg %p236
        %s827 = sand.u32 %s50, 1
        %s828 = scalar_lea.sflag [#allocation18], %s827
        %s829 = sand.u32 %s252, 1
        %s830 = smul.addr %s829, 96
        %s831 = scalar_lea.vmem [#allocation17], %s830
        %p832 = pneg %p265
        %p833 = pneg %p262
        %s834 = sand.u32 %s50, 1
        %s835 = scalar_lea.sflag [#allocation18], %s834
        %s836 = sand.u32 %s278, 1
        %s837 = smul.addr %s836, 16
        %s838 = scalar_lea.vmem [#allocation19], %s837
        %p839 = pneg %p291
        %p840 = pneg %p288
        %s841 = sand.u32 %s304, 1
        %s842 = scalar_lea.sflag [#allocation21], %s841
        %s843 = sand.u32 %s304, 1
        %s844 = smul.addr %s843, 16
        %s845 = scalar_lea.vmem [#allocation20], %s844
        %p846 = pneg %p317
        %p847 = pneg %p314
        %p848 = scmp.lt.s32.totalorder %s55, 1
        %s849 = scalar_select %p848, %s55, 1
        %s850 = smul.addr %s849, 2
        %s851 = scalar_lea.vmem %s10, %s850
        %p852 = pneg %p343
        %p853 = pneg %p340
        %p854 = scmp.lt.s32.totalorder %s55, 1
        %s855 = scalar_select %p854, %s55, 1
        %s856 = smul.addr %s855, 2
        %s857 = scalar_lea.vmem %s11, %s856
        %p858 = pneg %p369
        %p859 = pneg %p366
        %p860 = pneg %p395
        %p861 = pneg %p392
        %s862 = sand.u32 %s382, 1
        %s863 = scalar_lea.sflag [#allocation7], %s862
        %s864 = sand.u32 %s382, 1
        %s865 = scalar_lea.vmem [#allocation22], %s864
        %p866 = pneg %p421
        %p867 = pneg %p418
        %s868 = sand.u32 %s50, 1
        %s869 = scalar_lea.sflag [#allocation24], %s868
        %s870 = sand.u32 %s408, 1
        %s871 = scalar_lea.vmem [#allocation23], %s870
        %p872 = pneg %p447
        %p873 = pneg %p444
        %s874 = sand.u32 %s50, 1
        %s875 = scalar_lea.sflag [#allocation24], %s874
        %s876 = sand.u32 %s434, 1
        %s877 = scalar_lea.vmem [#allocation25], %s876
        %p878 = scmp.lt.s32.totalorder %s55, 1
        %s879 = scalar_select %p878, %s55, 1
        %s880 = smul.addr %s879, 2
        %s881 = scalar_lea.vmem %s10, %s880
        %p882 = scmp.lt.s32.totalorder %s55, 1
        %s883 = scalar_select %p882, %s55, 1
        %s884 = smul.addr %s883, 2
        %s885 = scalar_lea.vmem %s11, %s884
        %p886 = scmp.eq.s32.totalorder %s55, 0
        // Predicated region
        $region109: #{_lambda_.1} parent=67 // pred_check
          %p887 = pneg %p886
        $region110: #{_lambda_.1} parent=67 // pred_check_branch
          %889 = sbr.rel (%p887) target = $region112
        $region111: #{_lambda_.1} parent=67 // pred_region
          %v890 = vld [vmem:[%s693] sm:$0x1]
          %891 = vst [vmem:[#allocation2] sm:$0x1] %v890
          %892 = vst [vmem:[#allocation3] sm:$0x1] 0.0
          %893 = vst [vmem:[#allocation4] sm:$0x1] 0.0
        $region112: #{_lambda_.1} parent=67 // pred_fallthru
          _
        %v894 = vld [vmem:[#allocation2] sm:$0x1]
        %v895 = vld [vmem:[%s702] sm:$0xff]
        %v896 = vlaneseq
        %v897 = vand.u32 %v896, 127
        %v898 = vld [vmem:[%s711] sm:$0xff]
        %v899 = vld [vmem:[%s711 + $0x8] sm:$0xff]
        %v900 = vld [vmem:[%s711 + $0x10] sm:$0xff]
        %v901 = vld [vmem:[%s711 + $0x18] sm:$0xff]
        %v902 = vld [vmem:[%s711 + $0x20] sm:$0xff]
        %v903 = vld [vmem:[%s711 + $0x28] sm:$0xff]
        %v904 = vld [vmem:[%s711 + $0x30] sm:$0xff]
        %v905 = vld [vmem:[%s711 + $0x38] sm:$0xff]
        %vm906 = vcmp.ge.s32.totalorder %v897, 3
        %907 = vrot.lane.b32.xlu0 %v894, 3
        %v908 = vpop.permute.xlu0 %907
        %v909 = vsel %vm906, %v908, 0.0
        %911 = vset.pattern.permute.xlu0 0
        %912 = vperm.xlu0 %911, %v898
        %v913 = vpop.permute.xlu0 %912
        %916 = vset.pattern.permute.xlu0 0
        %917 = vperm.xlu0 %916, %v899
        %v918 = vpop.permute.xlu0 %917
        %v920 = vlaneseq
        %v921 = vshrl.u32 %v920, 7
        %v922 = vsub.s32 0, %v921
        %v923 = vrot.slane %v909, %v922
        %v924 = vmul.f32 %v913, %v923
        %v925 = vmul.f32 %v918, %v923
        %v926 = vadd.f32 %v924, 0.0
        %v927 = vadd.f32 %v925, 0.0
        %vm928 = vcmp.ge.s32.totalorder %v897, 2
        %929 = vrot.lane.b32.xlu0 %v894, 2
        %v930 = vpop.permute.xlu0 %929
        %v931 = vsel %vm928, %v930, 0.0
        %933 = vset.pattern.permute.xlu0 0
        %934 = vperm.xlu0 %933, %v900
        %v935 = vpop.permute.xlu0 %934
        %938 = vset.pattern.permute.xlu0 0
        %939 = vperm.xlu0 %938, %v901
        %v940 = vpop.permute.xlu0 %939
        %v942 = vlaneseq
        %v943 = vshrl.u32 %v942, 7
        %v944 = vsub.s32 0, %v943
        %v945 = vrot.slane %v931, %v944
        %v946 = vmul.f32 %v935, %v945
        %v947 = vmul.f32 %v940, %v945
        %v948 = vadd.f32 %v926, %v946
        %v949 = vadd.f32 %v927, %v947
        %vm950 = vcmp.ge.s32.totalorder %v897, 1
        %951 = vrot.lane.b32.xlu0 %v894, 1
        %v952 = vpop.permute.xlu0 %951
        %v953 = vsel %vm950, %v952, 0.0
        %955 = vset.pattern.permute.xlu0 0
        %956 = vperm.xlu0 %955, %v902
        %v957 = vpop.permute.xlu0 %956
        %960 = vset.pattern.permute.xlu0 0
        %961 = vperm.xlu0 %960, %v903
        %v962 = vpop.permute.xlu0 %961
        %v964 = vlaneseq
        %v965 = vshrl.u32 %v964, 7
        %v966 = vsub.s32 0, %v965
        %v967 = vrot.slane %v953, %v966
        %v968 = vmul.f32 %v957, %v967
        %v969 = vmul.f32 %v962, %v967
        %v970 = vadd.f32 %v948, %v968
        %v971 = vadd.f32 %v949, %v969
        %973 = vset.pattern.permute.xlu0 0
        %974 = vperm.xlu0 %973, %v904
        %v975 = vpop.permute.xlu0 %974
        %978 = vset.pattern.permute.xlu0 0
        %979 = vperm.xlu0 %978, %v905
        %v980 = vpop.permute.xlu0 %979
        %v983 = vlaneseq
        %v984 = vshrl.u32 %v983, 7
        %v985 = vsub.s32 0, %v984
        %v986 = vrot.slane %v894, %v985
        %v988 = vmul.f32 %v975, %v986
        %v989 = vmul.f32 %v980, %v986
        %v990 = vadd.f32 %v970, %v988
        %v991 = vadd.f32 %v971, %v989
        %v992 = vld [vmem:[%s720] sm:$0xff]
        %v993 = vld [vmem:[%s720 + $0x8] sm:$0xff]
        %995 = vset.pattern.permute.xlu0 0
        %996 = vperm.xlu0 %995, %v992
        %v997 = vpop.permute.xlu0 %996
        %1000 = vset.pattern.permute.xlu0 0
        %1001 = vperm.xlu0 %1000, %v993
        %v1002 = vpop.permute.xlu0 %1001
        %v1004 = vadd.f32 %v990, %v997
        %v1005 = vadd.f32 %v991, %v1002
        %v1006 = vmax.f32 %v1004, 0.0
        %v1007 = vmax.f32 %v1005, 0.0
        %1008 = vrot.lane.b32.xlu0 %v1006, 2
        %v1009 = vpop.permute.xlu0 %1008
        %1010 = vrot.lane.b32.xlu0 %v1007, 2
        %v1011 = vpop.permute.xlu0 %1010
        %v1012 = vsel %vm928, 1, 0
        %vm1013 = vcmp.eq.s32.totalorder %v1012, 1
        %v1014 = vsel %vm1013, %v1009, 0.0
        %v1015 = vsel %vm1013, %v1011, 0.0
        %1016 = vrot.lane.b32.xlu0 %v1006, 1
        %v1017 = vpop.permute.xlu0 %1016
        %1018 = vrot.lane.b32.xlu0 %v1007, 1
        %v1019 = vpop.permute.xlu0 %1018
        %v1020 = vsel %vm950, 1, 0
        %vm1021 = vcmp.eq.s32.totalorder %v1020, 1
        %v1022 = vsel %vm1021, %v1017, 0.0
        %v1023 = vsel %vm1021, %v1019, 0.0
        %v1024 = vld [vmem:[%s729] sm:$0xff]
        %v1025 = vld [vmem:[%s729 + $0x8] sm:$0xff]
        %v1026 = vld [vmem:[%s729 + $0x10] sm:$0xff]
        %v1027 = vld [vmem:[%s729 + $0x18] sm:$0xff]
        %v1028 = vld [vmem:[%s729 + $0x20] sm:$0xff]
        %v1029 = vld [vmem:[%s729 + $0x28] sm:$0xff]
        %v1030 = vld [vmem:[%s729 + $0x30] sm:$0xff]
        %v1031 = vld [vmem:[%s729 + $0x38] sm:$0xff]
        %v1032 = vld [vmem:[%s738] sm:$0xff]
        %v1033 = vld [vmem:[%s738 + $0x8] sm:$0xff]
        %v1034 = vld [vmem:[%s738 + $0x10] sm:$0xff]
        %v1035 = vld [vmem:[%s738 + $0x18] sm:$0xff]
        %v1036 = vld [vmem:[%s738 + $0x20] sm:$0xff]
        %v1037 = vld [vmem:[%s738 + $0x28] sm:$0xff]
        %v1038 = vld [vmem:[%s738 + $0x30] sm:$0xff]
        %v1039 = vld [vmem:[%s738 + $0x38] sm:$0xff]
        %1041 = vset.pattern.permute.xlu0 0
        %1042 = vperm.xlu0 %1041, %v1032
        %v1043 = vpop.permute.xlu0 %1042
        %1046 = vset.pattern.permute.xlu0 0
        %1047 = vperm.xlu0 %1046, %v1033
        %v1048 = vpop.permute.xlu0 %1047
        %1051 = vset.pattern.permute.xlu0 0
        %1052 = vperm.xlu0 %1051, %v1034
        %v1053 = vpop.permute.xlu0 %1052
        %1056 = vset.pattern.permute.xlu0 0
        %1057 = vperm.xlu0 %1056, %v1035
        %v1058 = vpop.permute.xlu0 %1057
        %1061 = vset.pattern.permute.xlu0 0
        %1062 = vperm.xlu0 %1061, %v1036
        %v1063 = vpop.permute.xlu0 %1062
        %1066 = vset.pattern.permute.xlu0 0
        %1067 = vperm.xlu0 %1066, %v1037
        %v1068 = vpop.permute.xlu0 %1067
        %1071 = vset.pattern.permute.xlu0 0
        %1072 = vperm.xlu0 %1071, %v1038
        %v1073 = vpop.permute.xlu0 %1072
        %1076 = vset.pattern.permute.xlu0 0
        %1077 = vperm.xlu0 %1076, %v1039
        %v1078 = vpop.permute.xlu0 %1077
        %vm1080 = vcmask 457728
        %v1082 = vsel %vm1080, %v1024, 0
        %v1085 = vsel %vm1080, %v1025, 0
        %v1088 = vsel %vm1080, %v1026, 0
        %v1091 = vsel %vm1080, %v1027, 0
        %v1094 = vsel %vm1080, %v1028, 0
        %v1097 = vsel %vm1080, %v1029, 0
        %v1100 = vsel %vm1080, %v1030, 0
        %v1103 = vsel %vm1080, %v1031, 0
        %1105 = vmatprep.subr.mxu0 0.0
        %1106 = vmatpush1.msra.mxu0 0.0
        %1107 = vmatprep.subr.mxu0 0.0
        %1108 = vmatpush1.msra.mxu0 0.0
        %1109 = vmatprep.subr.mxu0 0.0
        %1110 = vmatpush1.msra.mxu0 0.0
        %1111 = vmatprep.subr.mxu0 0.0
        %1112 = vmatpush1.msra.mxu0 0.0
        %1113 = vmatprep.subr.mxu0 0.0
        %1114 = vmatpush1.msra.mxu0 0.0
        %1115 = vmatprep.subr.mxu0 0.0
        %1116 = vmatpush1.msra.mxu0 0.0
        %1117 = vmatprep.subr.mxu0 0.0
        %1118 = vmatpush1.msra.mxu0 0.0
        %1119 = vmatprep.subr.mxu0 0.0
        %1120 = vmatpush1.msra.mxu0 0.0
        %1121 = vmatprep.subr.mxu0 0.0
        %1122 = vmatpush1.msra.mxu0 0.0
        %1123 = vmatprep.subr.mxu0 0.0
        %1124 = vmatpush1.msra.mxu0 %v1007
        %1125 = vmatprep.subr.mxu0 0.0
        %1126 = vmatpush1.msra.mxu0 %v1006
        %1127 = vmatprep.subr.mxu0 0.0
        %1128 = vmatpush1.msra.mxu0 %v1023
        %1129 = vmatprep.subr.mxu0 0.0
        %1130 = vmatpush1.msra.mxu0 %v1022
        %1131 = vmatprep.subr.mxu0 0.0
        %1132 = vmatpush1.msra.mxu0 %v1015
        %1133 = vmatprep.subr.mxu0 0.0
        %1134 = vmatpush1.msra.mxu0 %v1014
        %1135 = vmatprep.subr.mxu0 0.0
        %1136 = vmatpush1.msra.mxu0 %v895
        %1137 = vmatprep.subr.mxu0 0.0
        %1138 = vmatpush2.msra.mxu0 0.0
        %1139 = vmatprep.subr.mxu0 0.0
        %1140 = vmatpush2.msra.mxu0 0.0
        %1141 = vmatprep.subr.mxu0 0.0
        %1142 = vmatpush2.msra.mxu0 0.0
        %1143 = vmatprep.subr.mxu0 0.0
        %1144 = vmatpush2.msra.mxu0 0.0
        %1145 = vmatprep.subr.mxu0 0.0
        %1146 = vmatpush2.msra.mxu0 0.0
        %1147 = vmatprep.subr.mxu0 0.0
        %1148 = vmatpush2.msra.mxu0 0.0
        %1149 = vmatprep.subr.mxu0 0.0
        %1150 = vmatpush2.msra.mxu0 0.0
        %1151 = vmatprep.subr.mxu0 0.0
        %1152 = vmatpush2.msra.mxu0 0.0
        %1153 = vmatprep.subr.mxu0 0.0
        %1154 = vmatpush2.msra.mxu0 0.0
        %1155 = vmatprep.subr.mxu0 0.0
        %1156 = vmatpush2.msra.mxu0 0.0
        %1157 = vmatprep.subr.mxu0 0.0
        %1158 = vmatpush2.msra.mxu0 0.0
        %1159 = vmatprep.subr.mxu0 0.0
        %1160 = vmatpush2.msra.mxu0 0.0
        %1161 = vmatprep.subr.mxu0 0.0
        %1162 = vmatpush2.msra.mxu0 0.0
        %1163 = vmatprep.subr.mxu0 0.0
        %1164 = vmatpush2.msra.mxu0 0.0
        %1165 = vmatprep.subr.mxu0 0.0
        %1166 = vmatpush2.msra.mxu0 0.0
        %1167 = vmatprep.subr.mxu0 0.0
        %1168 = vmatpush2.msra.mxu0 0.0
        %1169 = vmatprep.mubr.f32.mxu0 0.0
        %1170 = vmatmul.mubr.f32.gmra.mxu0 %v1082
        %v1171 = vpop.f32.mrf.mxu0
        %v1172 = vadd.f32 %v1043, %v1171
        %v1173 = vpop.f32.mrf.mxu0
        %1174 = vmatprep.mubr.f32.mxu0 0.0
        %1175 = vmatmul.mubr.f32.gmra.mxu0 %v1085
        %v1176 = vpop.f32.mrf.mxu0
        %v1177 = vadd.f32 %v1048, %v1176
        %v1178 = vpop.f32.mrf.mxu0
        %1179 = vmatprep.mubr.f32.mxu0 0.0
        %1180 = vmatmul.mubr.f32.gmra.mxu0 %v1088
        %v1181 = vpop.f32.mrf.mxu0
        %v1182 = vadd.f32 %v1053, %v1181
        %v1183 = vpop.f32.mrf.mxu0
        %1184 = vmatprep.mubr.f32.mxu0 0.0
        %1185 = vmatmul.mubr.f32.gmra.mxu0 %v1091
        %v1186 = vpop.f32.mrf.mxu0
        %v1187 = vadd.f32 %v1058, %v1186
        %v1188 = vpop.f32.mrf.mxu0
        %1189 = vmatprep.mubr.f32.mxu0 0.0
        %1190 = vmatmul.mubr.f32.gmra.mxu0 %v1094
        %v1191 = vpop.f32.mrf.mxu0
        %v1192 = vadd.f32 %v1063, %v1191
        %v1193 = vpop.f32.mrf.mxu0
        %1194 = vmatprep.mubr.f32.mxu0 0.0
        %1195 = vmatmul.mubr.f32.gmra.mxu0 %v1097
        %v1196 = vpop.f32.mrf.mxu0
        %v1197 = vadd.f32 %v1068, %v1196
        %v1198 = vpop.f32.mrf.mxu0
        %1199 = vmatprep.mubr.f32.mxu0 0.0
        %1200 = vmatmul.mubr.f32.gmra.mxu0 %v1100
        %v1201 = vpop.f32.mrf.mxu0
        %v1202 = vadd.f32 %v1073, %v1201
        %v1203 = vpop.f32.mrf.mxu0
        %1204 = vmatprep.mubr.f32.mxu0 0.0
        %1205 = vmatmul.mubr.f32.gmra.mxu0 %v1103
        %v1206 = vpop.f32.mrf.mxu0
        %v1207 = vadd.f32 %v1078, %v1206
        %v1208 = vpop.f32.mrf.mxu0
        %1209 = vdwg.mxu0
        %v1210 = vtanh.pop %v1172
        %v1211 = vtanh.pop %v1177
        %v1212 = vtanh.pop %v1182
        %v1213 = vtanh.pop %v1187
        %v1214 = vxor.u32 %v1192, 2147483648
        %v1215 = vxor.u32 %v1197, 2147483648
        %v1216 = vxor.u32 %v1202, 2147483648
        %v1217 = vxor.u32 %v1207, 2147483648
        %v1218 = vmul.f32 %v1214, 1.442695
        %v1219 = vpow.pop %v1218
        %v1220 = vmul.f32 %v1215, 1.442695
        %v1221 = vpow.pop %v1220
        %v1222 = vmul.f32 %v1216, 1.442695
        %v1223 = vpow.pop %v1222
        %v1224 = vmul.f32 %v1217, 1.442695
        %v1225 = vpow.pop %v1224
        %v1226 = vadd.f32 %v1219, 1.0
        %v1227 = vadd.f32 %v1221, 1.0
        %v1228 = vadd.f32 %v1223, 1.0
        %v1229 = vadd.f32 %v1225, 1.0
        %v1230 = vrcp.pop %v1226
        %v1231 = vmul.f32 1.0, %v1230
        %v1232 = vrcp.pop %v1227
        %v1233 = vmul.f32 1.0, %v1232
        %v1234 = vrcp.pop %v1228
        %v1235 = vmul.f32 1.0, %v1234
        %v1236 = vrcp.pop %v1229
        %v1237 = vmul.f32 1.0, %v1236
        %v1238 = vmul.f32 %v1210, %v1231
        %v1239 = vmul.f32 %v1211, %v1233
        %v1240 = vmul.f32 %v1212, %v1235
        %v1241 = vmul.f32 %v1213, %v1237
        %v1242 = vld [vmem:[%s747] sm:$0xff]
        %v1243 = vld [vmem:[%s747 + $0x8] sm:$0xff]
        %v1244 = vld [vmem:[%s747 + $0x10] sm:$0xff]
        %v1245 = vld [vmem:[%s747 + $0x18] sm:$0xff]
        %v1246 = vld [vmem:[%s756] sm:$0xff]
        %v1247 = vld [vmem:[%s756 + $0x8] sm:$0xff]
        %v1248 = vld [vmem:[%s756 + $0x10] sm:$0xff]
        %v1249 = vld [vmem:[%s756 + $0x18] sm:$0xff]
        %1251 = vset.pattern.permute.xlu0 0
        %1252 = vperm.xlu0 %1251, %v1246
        %v1253 = vpop.permute.xlu0 %1252
        %1256 = vset.pattern.permute.xlu0 0
        %1257 = vperm.xlu0 %1256, %v1247
        %v1258 = vpop.permute.xlu0 %1257
        %1261 = vset.pattern.permute.xlu0 0
        %1262 = vperm.xlu0 %1261, %v1248
        %v1263 = vpop.permute.xlu0 %1262
        %1266 = vset.pattern.permute.xlu0 0
        %1267 = vperm.xlu0 %1266, %v1249
        %v1268 = vpop.permute.xlu0 %1267
        %vm1270 = vcmask 261120
        %v1272 = vsel %vm1270, %v1242, 0
        %v1275 = vsel %vm1270, %v1243, 0
        %v1278 = vsel %vm1270, %v1244, 0
        %v1281 = vsel %vm1270, %v1245, 0
        %1283 = vmatprep.subr.mxu0 0.0
        %1284 = vmatpush1.msra.mxu0 0.0
        %1285 = vmatprep.subr.mxu0 0.0
        %1286 = vmatpush1.msra.mxu0 0.0
        %1287 = vmatprep.subr.mxu0 0.0
        %1288 = vmatpush1.msra.mxu0 0.0
        %1289 = vmatprep.subr.mxu0 0.0
        %1290 = vmatpush1.msra.mxu0 0.0
        %1291 = vmatprep.subr.mxu0 0.0
        %1292 = vmatpush1.msra.mxu0 0.0
        %1293 = vmatprep.subr.mxu0 0.0
        %1294 = vmatpush1.msra.mxu0 0.0
        %1295 = vmatprep.subr.mxu0 0.0
        %1296 = vmatpush1.msra.mxu0 0.0
        %1297 = vmatprep.subr.mxu0 0.0
        %1298 = vmatpush1.msra.mxu0 0.0
        %1299 = vmatprep.subr.mxu0 0.0
        %1300 = vmatpush1.msra.mxu0 0.0
        %1301 = vmatprep.subr.mxu0 0.0
        %1302 = vmatpush1.msra.mxu0 0.0
        %1303 = vmatprep.subr.mxu0 0.0
        %1304 = vmatpush1.msra.mxu0 0.0
        %1305 = vmatprep.subr.mxu0 0.0
        %1306 = vmatpush1.msra.mxu0 0.0
        %1307 = vmatprep.subr.mxu0 0.0
        %1308 = vmatpush1.msra.mxu0 %v1241
        %1309 = vmatprep.subr.mxu0 0.0
        %1310 = vmatpush1.msra.mxu0 %v1240
        %1311 = vmatprep.subr.mxu0 0.0
        %1312 = vmatpush1.msra.mxu0 %v1239
        %1313 = vmatprep.subr.mxu0 0.0
        %1314 = vmatpush1.msra.mxu0 %v1238
        %1315 = vmatprep.subr.mxu0 0.0
        %1316 = vmatpush2.msra.mxu0 0.0
        %1317 = vmatprep.subr.mxu0 0.0
        %1318 = vmatpush2.msra.mxu0 0.0
        %1319 = vmatprep.subr.mxu0 0.0
        %1320 = vmatpush2.msra.mxu0 0.0
        %1321 = vmatprep.subr.mxu0 0.0
        %1322 = vmatpush2.msra.mxu0 0.0
        %1323 = vmatprep.subr.mxu0 0.0
        %1324 = vmatpush2.msra.mxu0 0.0
        %1325 = vmatprep.subr.mxu0 0.0
        %1326 = vmatpush2.msra.mxu0 0.0
        %1327 = vmatprep.subr.mxu0 0.0
        %1328 = vmatpush2.msra.mxu0 0.0
        %1329 = vmatprep.subr.mxu0 0.0
        %1330 = vmatpush2.msra.mxu0 0.0
        %1331 = vmatprep.subr.mxu0 0.0
        %1332 = vmatpush2.msra.mxu0 0.0
        %1333 = vmatprep.subr.mxu0 0.0
        %1334 = vmatpush2.msra.mxu0 0.0
        %1335 = vmatprep.subr.mxu0 0.0
        %1336 = vmatpush2.msra.mxu0 0.0
        %1337 = vmatprep.subr.mxu0 0.0
        %1338 = vmatpush2.msra.mxu0 0.0
        %1339 = vmatprep.subr.mxu0 0.0
        %1340 = vmatpush2.msra.mxu0 0.0
        %1341 = vmatprep.subr.mxu0 0.0
        %1342 = vmatpush2.msra.mxu0 0.0
        %1343 = vmatprep.subr.mxu0 0.0
        %1344 = vmatpush2.msra.mxu0 0.0
        %1345 = vmatprep.subr.mxu0 0.0
        %1346 = vmatpush2.msra.mxu0 0.0
        %1347 = vmatprep.mubr.f32.mxu0 0.0
        %1348 = vmatmul.mubr.f32.gmra.mxu0 %v1272
        %v1349 = vpop.f32.mrf.mxu0
        %v1350 = vadd.f32 %v1253, %v1349
        %v1351 = vpop.f32.mrf.mxu0
        %1352 = vmatprep.mubr.f32.mxu0 0.0
        %1353 = vmatmul.mubr.f32.gmra.mxu0 %v1275
        %v1354 = vpop.f32.mrf.mxu0
        %v1355 = vadd.f32 %v1258, %v1354
        %v1356 = vpop.f32.mrf.mxu0
        %1357 = vmatprep.mubr.f32.mxu0 0.0
        %1358 = vmatmul.mubr.f32.gmra.mxu0 %v1278
        %v1359 = vpop.f32.mrf.mxu0
        %v1360 = vadd.f32 %v1263, %v1359
        %v1361 = vpop.f32.mrf.mxu0
        %1362 = vmatprep.mubr.f32.mxu0 0.0
        %1363 = vmatmul.mubr.f32.gmra.mxu0 %v1281
        %v1364 = vpop.f32.mrf.mxu0
        %v1365 = vadd.f32 %v1268, %v1364
        %v1366 = vpop.f32.mrf.mxu0
        %1367 = vdwg.mxu0
        %v1368 = vadd.f32 %v1006, %v1350
        %v1369 = vadd.f32 %v1007, %v1355
        %v1370 = vmul.f32 %v1368, 0.70710677
        %v1371 = vmul.f32 %v1369, 0.70710677
        %v1372 = vadd.f32 %v1360, 0.0
        %v1373 = vadd.f32 %v1365, 0.0
        %vm1374 = vcmp.ge.s32.totalorder %v897, 4
        %1375 = vrot.lane.b32.xlu0 %v1370, 4
        %v1376 = vpop.permute.xlu0 %1375
        %1377 = vrot.lane.b32.xlu0 %v1371, 4
        %v1378 = vpop.permute.xlu0 %1377
        %v1379 = vsel %vm1374, 1, 0
        %vm1380 = vcmp.eq.s32.totalorder %v1379, 1
        %v1381 = vsel %vm1380, %v1376, 0.0
        %v1382 = vsel %vm1380, %v1378, 0.0
        %1383 = vrot.lane.b32.xlu0 %v1370, 2
        %v1384 = vpop.permute.xlu0 %1383
        %1385 = vrot.lane.b32.xlu0 %v1371, 2
        %v1386 = vpop.permute.xlu0 %1385
        %v1387 = vsel %vm1013, %v1384, 0.0
        %v1388 = vsel %vm1013, %v1386, 0.0
        %s1389 = scalar_lea.vmem %s729, 64 [#allocation13]
        %v1390 = vld [vmem:[%s1389] sm:$0xff]
        %v1391 = vld [vmem:[%s1389 + $0x8] sm:$0xff]
        %v1392 = vld [vmem:[%s1389 + $0x10] sm:$0xff]
        %v1393 = vld [vmem:[%s1389 + $0x18] sm:$0xff]
        %v1394 = vld [vmem:[%s1389 + $0x20] sm:$0xff]
        %v1395 = vld [vmem:[%s1389 + $0x28] sm:$0xff]
        %v1396 = vld [vmem:[%s1389 + $0x30] sm:$0xff]
        %v1397 = vld [vmem:[%s1389 + $0x38] sm:$0xff]
        %s1398 = scalar_lea.vmem %s738, 64 [#allocation14]
        %v1399 = vld [vmem:[%s1398] sm:$0xff]
        %v1400 = vld [vmem:[%s1398 + $0x8] sm:$0xff]
        %v1401 = vld [vmem:[%s1398 + $0x10] sm:$0xff]
        %v1402 = vld [vmem:[%s1398 + $0x18] sm:$0xff]
        %v1403 = vld [vmem:[%s1398 + $0x20] sm:$0xff]
        %v1404 = vld [vmem:[%s1398 + $0x28] sm:$0xff]
        %v1405 = vld [vmem:[%s1398 + $0x30] sm:$0xff]
        %v1406 = vld [vmem:[%s1398 + $0x38] sm:$0xff]
        %1408 = vset.pattern.permute.xlu0 0
        %1409 = vperm.xlu0 %1408, %v1399
        %v1410 = vpop.permute.xlu0 %1409
        %1413 = vset.pattern.permute.xlu0 0
        %1414 = vperm.xlu0 %1413, %v1400
        %v1415 = vpop.permute.xlu0 %1414
        %1418 = vset.pattern.permute.xlu0 0
        %1419 = vperm.xlu0 %1418, %v1401
        %v1420 = vpop.permute.xlu0 %1419
        %1423 = vset.pattern.permute.xlu0 0
        %1424 = vperm.xlu0 %1423, %v1402
        %v1425 = vpop.permute.xlu0 %1424
        %1428 = vset.pattern.permute.xlu0 0
        %1429 = vperm.xlu0 %1428, %v1403
        %v1430 = vpop.permute.xlu0 %1429
        %1433 = vset.pattern.permute.xlu0 0
        %1434 = vperm.xlu0 %1433, %v1404
        %v1435 = vpop.permute.xlu0 %1434
        %1438 = vset.pattern.permute.xlu0 0
        %1439 = vperm.xlu0 %1438, %v1405
        %v1440 = vpop.permute.xlu0 %1439
        %1443 = vset.pattern.permute.xlu0 0
        %1444 = vperm.xlu0 %1443, %v1406
        %v1445 = vpop.permute.xlu0 %1444
        %v1448 = vsel %vm1080, %v1390, 0
        %v1451 = vsel %vm1080, %v1391, 0
        %v1454 = vsel %vm1080, %v1392, 0
        %v1457 = vsel %vm1080, %v1393, 0
        %v1460 = vsel %vm1080, %v1394, 0
        %v1463 = vsel %vm1080, %v1395, 0
        %v1466 = vsel %vm1080, %v1396, 0
        %v1469 = vsel %vm1080, %v1397, 0
        %1471 = vmatprep.subr.mxu0 0.0
        %1472 = vmatpush1.msra.mxu0 0.0
        %1473 = vmatprep.subr.mxu0 0.0
        %1474 = vmatpush1.msra.mxu0 0.0
        %1475 = vmatprep.subr.mxu0 0.0
        %1476 = vmatpush1.msra.mxu0 0.0
        %1477 = vmatprep.subr.mxu0 0.0
        %1478 = vmatpush1.msra.mxu0 0.0
        %1479 = vmatprep.subr.mxu0 0.0
        %1480 = vmatpush1.msra.mxu0 0.0
        %1481 = vmatprep.subr.mxu0 0.0
        %1482 = vmatpush1.msra.mxu0 0.0
        %1483 = vmatprep.subr.mxu0 0.0
        %1484 = vmatpush1.msra.mxu0 0.0
        %1485 = vmatprep.subr.mxu0 0.0
        %1486 = vmatpush1.msra.mxu0 0.0
        %1487 = vmatprep.subr.mxu0 0.0
        %1488 = vmatpush1.msra.mxu0 0.0
        %1489 = vmatprep.subr.mxu0 0.0
        %1490 = vmatpush1.msra.mxu0 %v1371
        %1491 = vmatprep.subr.mxu0 0.0
        %1492 = vmatpush1.msra.mxu0 %v1370
        %1493 = vmatprep.subr.mxu0 0.0
        %1494 = vmatpush1.msra.mxu0 %v1388
        %1495 = vmatprep.subr.mxu0 0.0
        %1496 = vmatpush1.msra.mxu0 %v1387
        %1497 = vmatprep.subr.mxu0 0.0
        %1498 = vmatpush1.msra.mxu0 %v1382
        %1499 = vmatprep.subr.mxu0 0.0
        %1500 = vmatpush1.msra.mxu0 %v1381
        %1501 = vmatprep.subr.mxu0 0.0
        %1502 = vmatpush1.msra.mxu0 %v895
        %1503 = vmatprep.subr.mxu0 0.0
        %1504 = vmatpush2.msra.mxu0 0.0
        %1505 = vmatprep.subr.mxu0 0.0
        %1506 = vmatpush2.msra.mxu0 0.0
        %1507 = vmatprep.subr.mxu0 0.0
        %1508 = vmatpush2.msra.mxu0 0.0
        %1509 = vmatprep.subr.mxu0 0.0
        %1510 = vmatpush2.msra.mxu0 0.0
        %1511 = vmatprep.subr.mxu0 0.0
        %1512 = vmatpush2.msra.mxu0 0.0
        %1513 = vmatprep.subr.mxu0 0.0
        %1514 = vmatpush2.msra.mxu0 0.0
        %1515 = vmatprep.subr.mxu0 0.0
        %1516 = vmatpush2.msra.mxu0 0.0
        %1517 = vmatprep.subr.mxu0 0.0
        %1518 = vmatpush2.msra.mxu0 0.0
        %1519 = vmatprep.subr.mxu0 0.0
        %1520 = vmatpush2.msra.mxu0 0.0
        %1521 = vmatprep.subr.mxu0 0.0
        %1522 = vmatpush2.msra.mxu0 0.0
        %1523 = vmatprep.subr.mxu0 0.0
        %1524 = vmatpush2.msra.mxu0 0.0
        %1525 = vmatprep.subr.mxu0 0.0
        %1526 = vmatpush2.msra.mxu0 0.0
        %1527 = vmatprep.subr.mxu0 0.0
        %1528 = vmatpush2.msra.mxu0 0.0
        %1529 = vmatprep.subr.mxu0 0.0
        %1530 = vmatpush2.msra.mxu0 0.0
        %1531 = vmatprep.subr.mxu0 0.0
        %1532 = vmatpush2.msra.mxu0 0.0
        %1533 = vmatprep.subr.mxu0 0.0
        %1534 = vmatpush2.msra.mxu0 0.0
        %1535 = vmatprep.mubr.f32.mxu0 0.0
        %1536 = vmatmul.mubr.f32.gmra.mxu0 %v1448
        %v1537 = vpop.f32.mrf.mxu0
        %v1538 = vadd.f32 %v1410, %v1537
        %v1539 = vpop.f32.mrf.mxu0
        %1540 = vmatprep.mubr.f32.mxu0 0.0
        %1541 = vmatmul.mubr.f32.gmra.mxu0 %v1451
        %v1542 = vpop.f32.mrf.mxu0
        %v1543 = vadd.f32 %v1415, %v1542
        %v1544 = vpop.f32.mrf.mxu0
        %1545 = vmatprep.mubr.f32.mxu0 0.0
        %1546 = vmatmul.mubr.f32.gmra.mxu0 %v1454
        %v1547 = vpop.f32.mrf.mxu0
        %v1548 = vadd.f32 %v1420, %v1547
        %v1549 = vpop.f32.mrf.mxu0
        %1550 = vmatprep.mubr.f32.mxu0 0.0
        %1551 = vmatmul.mubr.f32.gmra.mxu0 %v1457
        %v1552 = vpop.f32.mrf.mxu0
        %v1553 = vadd.f32 %v1425, %v1552
        %v1554 = vpop.f32.mrf.mxu0
        %1555 = vmatprep.mubr.f32.mxu0 0.0
        %1556 = vmatmul.mubr.f32.gmra.mxu0 %v1460
        %v1557 = vpop.f32.mrf.mxu0
        %v1558 = vadd.f32 %v1430, %v1557
        %v1559 = vpop.f32.mrf.mxu0
        %1560 = vmatprep.mubr.f32.mxu0 0.0
        %1561 = vmatmul.mubr.f32.gmra.mxu0 %v1463
        %v1562 = vpop.f32.mrf.mxu0
        %v1563 = vadd.f32 %v1435, %v1562
        %v1564 = vpop.f32.mrf.mxu0
        %1565 = vmatprep.mubr.f32.mxu0 0.0
        %1566 = vmatmul.mubr.f32.gmra.mxu0 %v1466
        %v1567 = vpop.f32.mrf.mxu0
        %v1568 = vadd.f32 %v1440, %v1567
        %v1569 = vpop.f32.mrf.mxu0
        %1570 = vmatprep.mubr.f32.mxu0 0.0
        %1571 = vmatmul.mubr.f32.gmra.mxu0 %v1469
        %v1572 = vpop.f32.mrf.mxu0
        %v1573 = vadd.f32 %v1445, %v1572
        %v1574 = vpop.f32.mrf.mxu0
        %1575 = vdwg.mxu0
        %v1576 = vtanh.pop %v1538
        %v1577 = vtanh.pop %v1543
        %v1578 = vtanh.pop %v1548
        %v1579 = vtanh.pop %v1553
        %v1580 = vxor.u32 %v1558, 2147483648
        %v1581 = vxor.u32 %v1563, 2147483648
        %v1582 = vxor.u32 %v1568, 2147483648
        %v1583 = vxor.u32 %v1573, 2147483648
        %v1584 = vmul.f32 %v1580, 1.442695
        %v1585 = vpow.pop %v1584
        %v1586 = vmul.f32 %v1581, 1.442695
        %v1587 = vpow.pop %v1586
        %v1588 = vmul.f32 %v1582, 1.442695
        %v1589 = vpow.pop %v1588
        %v1590 = vmul.f32 %v1583, 1.442695
        %v1591 = vpow.pop %v1590
        %v1592 = vadd.f32 %v1585, 1.0
        %v1593 = vadd.f32 %v1587, 1.0
        %v1594 = vadd.f32 %v1589, 1.0
        %v1595 = vadd.f32 %v1591, 1.0
        %v1596 = vrcp.pop %v1592
        %v1597 = vmul.f32 1.0, %v1596
        %v1598 = vrcp.pop %v1593
        %v1599 = vmul.f32 1.0, %v1598
        %v1600 = vrcp.pop %v1594
        %v1601 = vmul.f32 1.0, %v1600
        %v1602 = vrcp.pop %v1595
        %v1603 = vmul.f32 1.0, %v1602
        %v1604 = vmul.f32 %v1576, %v1597
        %v1605 = vmul.f32 %v1577, %v1599
        %v1606 = vmul.f32 %v1578, %v1601
        %v1607 = vmul.f32 %v1579, %v1603
        %s1608 = scalar_lea.vmem %s747, 32 [#allocation16]
        %v1609 = vld [vmem:[%s1608] sm:$0xff]
        %v1610 = vld [vmem:[%s1608 + $0x8] sm:$0xff]
        %v1611 = vld [vmem:[%s1608 + $0x10] sm:$0xff]
        %v1612 = vld [vmem:[%s1608 + $0x18] sm:$0xff]
        %s1613 = scalar_lea.vmem %s756, 32 [#allocation17]
        %v1614 = vld [vmem:[%s1613] sm:$0xff]
        %v1615 = vld [vmem:[%s1613 + $0x8] sm:$0xff]
        %v1616 = vld [vmem:[%s1613 + $0x10] sm:$0xff]
        %v1617 = vld [vmem:[%s1613 + $0x18] sm:$0xff]
        %1619 = vset.pattern.permute.xlu0 0
        %1620 = vperm.xlu0 %1619, %v1614
        %v1621 = vpop.permute.xlu0 %1620
        %1624 = vset.pattern.permute.xlu0 0
        %1625 = vperm.xlu0 %1624, %v1615
        %v1626 = vpop.permute.xlu0 %1625
        %1629 = vset.pattern.permute.xlu0 0
        %1630 = vperm.xlu0 %1629, %v1616
        %v1631 = vpop.permute.xlu0 %1630
        %1634 = vset.pattern.permute.xlu0 0
        %1635 = vperm.xlu0 %1634, %v1617
        %v1636 = vpop.permute.xlu0 %1635
        %v1639 = vsel %vm1270, %v1609, 0
        %v1642 = vsel %vm1270, %v1610, 0
        %v1645 = vsel %vm1270, %v1611, 0
        %v1648 = vsel %vm1270, %v1612, 0
        %1650 = vmatprep.subr.mxu0 0.0
        %1651 = vmatpush1.msra.mxu0 0.0
        %1652 = vmatprep.subr.mxu0 0.0
        %1653 = vmatpush1.msra.mxu0 0.0
        %1654 = vmatprep.subr.mxu0 0.0
        %1655 = vmatpush1.msra.mxu0 0.0
        %1656 = vmatprep.subr.mxu0 0.0
        %1657 = vmatpush1.msra.mxu0 0.0
        %1658 = vmatprep.subr.mxu0 0.0
        %1659 = vmatpush1.msra.mxu0 0.0
        %1660 = vmatprep.subr.mxu0 0.0
        %1661 = vmatpush1.msra.mxu0 0.0
        %1662 = vmatprep.subr.mxu0 0.0
        %1663 = vmatpush1.msra.mxu0 0.0
        %1664 = vmatprep.subr.mxu0 0.0
        %1665 = vmatpush1.msra.mxu0 0.0
        %1666 = vmatprep.subr.mxu0 0.0
        %1667 = vmatpush1.msra.mxu0 0.0
        %1668 = vmatprep.subr.mxu0 0.0
        %1669 = vmatpush1.msra.mxu0 0.0
        %1670 = vmatprep.subr.mxu0 0.0
        %1671 = vmatpush1.msra.mxu0 0.0
        %1672 = vmatprep.subr.mxu0 0.0
        %1673 = vmatpush1.msra.mxu0 0.0
        %1674 = vmatprep.subr.mxu0 0.0
        %1675 = vmatpush1.msra.mxu0 %v1607
        %1676 = vmatprep.subr.mxu0 0.0
        %1677 = vmatpush1.msra.mxu0 %v1606
        %1678 = vmatprep.subr.mxu0 0.0
        %1679 = vmatpush1.msra.mxu0 %v1605
        %1680 = vmatprep.subr.mxu0 0.0
        %1681 = vmatpush1.msra.mxu0 %v1604
        %1682 = vmatprep.subr.mxu0 0.0
        %1683 = vmatpush2.msra.mxu0 0.0
        %1684 = vmatprep.subr.mxu0 0.0
        %1685 = vmatpush2.msra.mxu0 0.0
        %1686 = vmatprep.subr.mxu0 0.0
        %1687 = vmatpush2.msra.mxu0 0.0
        %1688 = vmatprep.subr.mxu0 0.0
        %1689 = vmatpush2.msra.mxu0 0.0
        %1690 = vmatprep.subr.mxu0 0.0
        %1691 = vmatpush2.msra.mxu0 0.0
        %1692 = vmatprep.subr.mxu0 0.0
        %1693 = vmatpush2.msra.mxu0 0.0
        %1694 = vmatprep.subr.mxu0 0.0
        %1695 = vmatpush2.msra.mxu0 0.0
        %1696 = vmatprep.subr.mxu0 0.0
        %1697 = vmatpush2.msra.mxu0 0.0
        %1698 = vmatprep.subr.mxu0 0.0
        %1699 = vmatpush2.msra.mxu0 0.0
        %1700 = vmatprep.subr.mxu0 0.0
        %1701 = vmatpush2.msra.mxu0 0.0
        %1702 = vmatprep.subr.mxu0 0.0
        %1703 = vmatpush2.msra.mxu0 0.0
        %1704 = vmatprep.subr.mxu0 0.0
        %1705 = vmatpush2.msra.mxu0 0.0
        %1706 = vmatprep.subr.mxu0 0.0
        %1707 = vmatpush2.msra.mxu0 0.0
        %1708 = vmatprep.subr.mxu0 0.0
        %1709 = vmatpush2.msra.mxu0 0.0
        %1710 = vmatprep.subr.mxu0 0.0
        %1711 = vmatpush2.msra.mxu0 0.0
        %1712 = vmatprep.subr.mxu0 0.0
        %1713 = vmatpush2.msra.mxu0 0.0
        %1714 = vmatprep.mubr.f32.mxu0 0.0
        %1715 = vmatmul.mubr.f32.gmra.mxu0 %v1639
        %v1716 = vpop.f32.mrf.mxu0
        %v1717 = vadd.f32 %v1621, %v1716
        %v1718 = vpop.f32.mrf.mxu0
        %1719 = vmatprep.mubr.f32.mxu0 0.0
        %1720 = vmatmul.mubr.f32.gmra.mxu0 %v1642
        %v1721 = vpop.f32.mrf.mxu0
        %v1722 = vadd.f32 %v1626, %v1721
        %v1723 = vpop.f32.mrf.mxu0
        %1724 = vmatprep.mubr.f32.mxu0 0.0
        %1725 = vmatmul.mubr.f32.gmra.mxu0 %v1645
        %v1726 = vpop.f32.mrf.mxu0
        %v1727 = vadd.f32 %v1631, %v1726
        %v1728 = vpop.f32.mrf.mxu0
        %1729 = vmatprep.mubr.f32.mxu0 0.0
        %1730 = vmatmul.mubr.f32.gmra.mxu0 %v1648
        %v1731 = vpop.f32.mrf.mxu0
        %v1732 = vadd.f32 %v1636, %v1731
        %v1733 = vpop.f32.mrf.mxu0
        %1734 = vdwg.mxu0
        %v1735 = vadd.f32 %v1370, %v1717
        %v1736 = vadd.f32 %v1371, %v1722
        %v1737 = vmul.f32 %v1735, 0.70710677
        %v1738 = vmul.f32 %v1736, 0.70710677
        %v1739 = vadd.f32 %v1372, %v1727
        %v1740 = vadd.f32 %v1373, %v1732
        %vm1741 = vcmp.ge.s32.totalorder %v897, 8
        %1742 = vrot.lane.b32.xlu0 %v1737, 8
        %v1743 = vpop.permute.xlu0 %1742
        %1744 = vrot.lane.b32.xlu0 %v1738, 8
        %v1745 = vpop.permute.xlu0 %1744
        %v1746 = vsel %vm1741, 1, 0
        %vm1747 = vcmp.eq.s32.totalorder %v1746, 1
        %v1748 = vsel %vm1747, %v1743, 0.0
        %v1749 = vsel %vm1747, %v1745, 0.0
        %1750 = vrot.lane.b32.xlu0 %v1737, 4
        %v1751 = vpop.permute.xlu0 %1750
        %1752 = vrot.lane.b32.xlu0 %v1738, 4
        %v1753 = vpop.permute.xlu0 %1752
        %v1754 = vsel %vm1380, %v1751, 0.0
        %v1755 = vsel %vm1380, %v1753, 0.0
        %s1756 = scalar_lea.vmem %s729, 128 [#allocation13]
        %v1757 = vld [vmem:[%s1756] sm:$0xff]
        %v1758 = vld [vmem:[%s1756 + $0x8] sm:$0xff]
        %v1759 = vld [vmem:[%s1756 + $0x10] sm:$0xff]
        %v1760 = vld [vmem:[%s1756 + $0x18] sm:$0xff]
        %v1761 = vld [vmem:[%s1756 + $0x20] sm:$0xff]
        %v1762 = vld [vmem:[%s1756 + $0x28] sm:$0xff]
        %v1763 = vld [vmem:[%s1756 + $0x30] sm:$0xff]
        %v1764 = vld [vmem:[%s1756 + $0x38] sm:$0xff]
        %s1765 = scalar_lea.vmem %s738, 128 [#allocation14]
        %v1766 = vld [vmem:[%s1765] sm:$0xff]
        %v1767 = vld [vmem:[%s1765 + $0x8] sm:$0xff]
        %v1768 = vld [vmem:[%s1765 + $0x10] sm:$0xff]
        %v1769 = vld [vmem:[%s1765 + $0x18] sm:$0xff]
        %v1770 = vld [vmem:[%s1765 + $0x20] sm:$0xff]
        %v1771 = vld [vmem:[%s1765 + $0x28] sm:$0xff]
        %v1772 = vld [vmem:[%s1765 + $0x30] sm:$0xff]
        %v1773 = vld [vmem:[%s1765 + $0x38] sm:$0xff]
        %1775 = vset.pattern.permute.xlu0 0
        %1776 = vperm.xlu0 %1775, %v1766
        %v1777 = vpop.permute.xlu0 %1776
        %1780 = vset.pattern.permute.xlu0 0
        %1781 = vperm.xlu0 %1780, %v1767
        %v1782 = vpop.permute.xlu0 %1781
        %1785 = vset.pattern.permute.xlu0 0
        %1786 = vperm.xlu0 %1785, %v1768
        %v1787 = vpop.permute.xlu0 %1786
        %1790 = vset.pattern.permute.xlu0 0
        %1791 = vperm.xlu0 %1790, %v1769
        %v1792 = vpop.permute.xlu0 %1791
        %1795 = vset.pattern.permute.xlu0 0
        %1796 = vperm.xlu0 %1795, %v1770
        %v1797 = vpop.permute.xlu0 %1796
        %1800 = vset.pattern.permute.xlu0 0
        %1801 = vperm.xlu0 %1800, %v1771
        %v1802 = vpop.permute.xlu0 %1801
        %1805 = vset.pattern.permute.xlu0 0
        %1806 = vperm.xlu0 %1805, %v1772
        %v1807 = vpop.permute.xlu0 %1806
        %1810 = vset.pattern.permute.xlu0 0
        %1811 = vperm.xlu0 %1810, %v1773
        %v1812 = vpop.permute.xlu0 %1811
        %v1815 = vsel %vm1080, %v1757, 0
        %v1818 = vsel %vm1080, %v1758, 0
        %v1821 = vsel %vm1080, %v1759, 0
        %v1824 = vsel %vm1080, %v1760, 0
        %v1827 = vsel %vm1080, %v1761, 0
        %v1830 = vsel %vm1080, %v1762, 0
        %v1833 = vsel %vm1080, %v1763, 0
        %v1836 = vsel %vm1080, %v1764, 0
        %1838 = vmatprep.subr.mxu0 0.0
        %1839 = vmatpush1.msra.mxu0 0.0
        %1840 = vmatprep.subr.mxu0 0.0
        %1841 = vmatpush1.msra.mxu0 0.0
        %1842 = vmatprep.subr.mxu0 0.0
        %1843 = vmatpush1.msra.mxu0 0.0
        %1844 = vmatprep.subr.mxu0 0.0
        %1845 = vmatpush1.msra.mxu0 0.0
        %1846 = vmatprep.subr.mxu0 0.0
        %1847 = vmatpush1.msra.mxu0 0.0
        %1848 = vmatprep.subr.mxu0 0.0
        %1849 = vmatpush1.msra.mxu0 0.0
        %1850 = vmatprep.subr.mxu0 0.0
        %1851 = vmatpush1.msra.mxu0 0.0
        %1852 = vmatprep.subr.mxu0 0.0
        %1853 = vmatpush1.msra.mxu0 0.0
        %1854 = vmatprep.subr.mxu0 0.0
        %1855 = vmatpush1.msra.mxu0 0.0
        %1856 = vmatprep.subr.mxu0 0.0
        %1857 = vmatpush1.msra.mxu0 %v1738
        %1858 = vmatprep.subr.mxu0 0.0
        %1859 = vmatpush1.msra.mxu0 %v1737
        %1860 = vmatprep.subr.mxu0 0.0
        %1861 = vmatpush1.msra.mxu0 %v1755
        %1862 = vmatprep.subr.mxu0 0.0
        %1863 = vmatpush1.msra.mxu0 %v1754
        %1864 = vmatprep.subr.mxu0 0.0
        %1865 = vmatpush1.msra.mxu0 %v1749
        %1866 = vmatprep.subr.mxu0 0.0
        %1867 = vmatpush1.msra.mxu0 %v1748
        %1868 = vmatprep.subr.mxu0 0.0
        %1869 = vmatpush1.msra.mxu0 %v895
        %1870 = vmatprep.subr.mxu0 0.0
        %1871 = vmatpush2.msra.mxu0 0.0
        %1872 = vmatprep.subr.mxu0 0.0
        %1873 = vmatpush2.msra.mxu0 0.0
        %1874 = vmatprep.subr.mxu0 0.0
        %1875 = vmatpush2.msra.mxu0 0.0
        %1876 = vmatprep.subr.mxu0 0.0
        %1877 = vmatpush2.msra.mxu0 0.0
        %1878 = vmatprep.subr.mxu0 0.0
        %1879 = vmatpush2.msra.mxu0 0.0
        %1880 = vmatprep.subr.mxu0 0.0
        %1881 = vmatpush2.msra.mxu0 0.0
        %1882 = vmatprep.subr.mxu0 0.0
        %1883 = vmatpush2.msra.mxu0 0.0
        %1884 = vmatprep.subr.mxu0 0.0
        %1885 = vmatpush2.msra.mxu0 0.0
        %1886 = vmatprep.subr.mxu0 0.0
        %1887 = vmatpush2.msra.mxu0 0.0
        %1888 = vmatprep.subr.mxu0 0.0
        %1889 = vmatpush2.msra.mxu0 0.0
        %1890 = vmatprep.subr.mxu0 0.0
        %1891 = vmatpush2.msra.mxu0 0.0
        %1892 = vmatprep.subr.mxu0 0.0
        %1893 = vmatpush2.msra.mxu0 0.0
        %1894 = vmatprep.subr.mxu0 0.0
        %1895 = vmatpush2.msra.mxu0 0.0
        %1896 = vmatprep.subr.mxu0 0.0
        %1897 = vmatpush2.msra.mxu0 0.0
        %1898 = vmatprep.subr.mxu0 0.0
        %1899 = vmatpush2.msra.mxu0 0.0
        %1900 = vmatprep.subr.mxu0 0.0
        %1901 = vmatpush2.msra.mxu0 0.0
        %1902 = vmatprep.mubr.f32.mxu0 0.0
        %1903 = vmatmul.mubr.f32.gmra.mxu0 %v1815
        %v1904 = vpop.f32.mrf.mxu0
        %v1905 = vadd.f32 %v1777, %v1904
        %v1906 = vpop.f32.mrf.mxu0
        %1907 = vmatprep.mubr.f32.mxu0 0.0
        %1908 = vmatmul.mubr.f32.gmra.mxu0 %v1818
        %v1909 = vpop.f32.mrf.mxu0
        %v1910 = vadd.f32 %v1782, %v1909
        %v1911 = vpop.f32.mrf.mxu0
        %1912 = vmatprep.mubr.f32.mxu0 0.0
        %1913 = vmatmul.mubr.f32.gmra.mxu0 %v1821
        %v1914 = vpop.f32.mrf.mxu0
        %v1915 = vadd.f32 %v1787, %v1914
        %v1916 = vpop.f32.mrf.mxu0
        %1917 = vmatprep.mubr.f32.mxu0 0.0
        %1918 = vmatmul.mubr.f32.gmra.mxu0 %v1824
        %v1919 = vpop.f32.mrf.mxu0
        %v1920 = vadd.f32 %v1792, %v1919
        %v1921 = vpop.f32.mrf.mxu0
        %1922 = vmatprep.mubr.f32.mxu0 0.0
        %1923 = vmatmul.mubr.f32.gmra.mxu0 %v1827
        %v1924 = vpop.f32.mrf.mxu0
        %v1925 = vadd.f32 %v1797, %v1924
        %v1926 = vpop.f32.mrf.mxu0
        %1927 = vmatprep.mubr.f32.mxu0 0.0
        %1928 = vmatmul.mubr.f32.gmra.mxu0 %v1830
        %v1929 = vpop.f32.mrf.mxu0
        %v1930 = vadd.f32 %v1802, %v1929
        %v1931 = vpop.f32.mrf.mxu0
        %1932 = vmatprep.mubr.f32.mxu0 0.0
        %1933 = vmatmul.mubr.f32.gmra.mxu0 %v1833
        %v1934 = vpop.f32.mrf.mxu0
        %v1935 = vadd.f32 %v1807, %v1934
        %v1936 = vpop.f32.mrf.mxu0
        %1937 = vmatprep.mubr.f32.mxu0 0.0
        %1938 = vmatmul.mubr.f32.gmra.mxu0 %v1836
        %v1939 = vpop.f32.mrf.mxu0
        %v1940 = vadd.f32 %v1812, %v1939
        %v1941 = vpop.f32.mrf.mxu0
        %1942 = vdwg.mxu0
        %v1943 = vtanh.pop %v1905
        %v1944 = vtanh.pop %v1910
        %v1945 = vtanh.pop %v1915
        %v1946 = vtanh.pop %v1920
        %v1947 = vxor.u32 %v1925, 2147483648
        %v1948 = vxor.u32 %v1930, 2147483648
        %v1949 = vxor.u32 %v1935, 2147483648
        %v1950 = vxor.u32 %v1940, 2147483648
        %v1951 = vmul.f32 %v1947, 1.442695
        %v1952 = vpow.pop %v1951
        %v1953 = vmul.f32 %v1948, 1.442695
        %v1954 = vpow.pop %v1953
        %v1955 = vmul.f32 %v1949, 1.442695
        %v1956 = vpow.pop %v1955
        %v1957 = vmul.f32 %v1950, 1.442695
        %v1958 = vpow.pop %v1957
        %v1959 = vadd.f32 %v1952, 1.0
        %v1960 = vadd.f32 %v1954, 1.0
        %v1961 = vadd.f32 %v1956, 1.0
        %v1962 = vadd.f32 %v1958, 1.0
        %v1963 = vrcp.pop %v1959
        %v1964 = vmul.f32 1.0, %v1963
        %v1965 = vrcp.pop %v1960
        %v1966 = vmul.f32 1.0, %v1965
        %v1967 = vrcp.pop %v1961
        %v1968 = vmul.f32 1.0, %v1967
        %v1969 = vrcp.pop %v1962
        %v1970 = vmul.f32 1.0, %v1969
        %v1971 = vmul.f32 %v1943, %v1964
        %v1972 = vmul.f32 %v1944, %v1966
        %v1973 = vmul.f32 %v1945, %v1968
        %v1974 = vmul.f32 %v1946, %v1970
        %s1975 = scalar_lea.vmem %s747, 64 [#allocation16]
        %v1976 = vld [vmem:[%s1975] sm:$0xff]
        %v1977 = vld [vmem:[%s1975 + $0x8] sm:$0xff]
        %v1978 = vld [vmem:[%s1975 + $0x10] sm:$0xff]
        %v1979 = vld [vmem:[%s1975 + $0x18] sm:$0xff]
        %s1980 = scalar_lea.vmem %s756, 64 [#allocation17]
        %v1981 = vld [vmem:[%s1980] sm:$0xff]
        %v1982 = vld [vmem:[%s1980 + $0x8] sm:$0xff]
        %v1983 = vld [vmem:[%s1980 + $0x10] sm:$0xff]
        %v1984 = vld [vmem:[%s1980 + $0x18] sm:$0xff]
        %1986 = vset.pattern.permute.xlu0 0
        %1987 = vperm.xlu0 %1986, %v1981
        %v1988 = vpop.permute.xlu0 %1987
        %1990 = vset.pattern.permute.xlu0 0
        %1991 = vperm.xlu0 %1990, %v1982
        %v1992 = vpop.permute.xlu0 %1991
        %1994 = vset.pattern.permute.xlu0 0
        %1995 = vperm.xlu0 %1994, %v1983
        %v1996 = vpop.permute.xlu0 %1995
        %1999 = vset.pattern.permute.xlu0 0
        %2000 = vperm.xlu0 %1999, %v1984
        %v2001 = vpop.permute.xlu0 %2000
        %v2004 = vsel %vm1270, %v1976, 0
        %v2007 = vsel %vm1270, %v1977, 0
        %v2010 = vsel %vm1270, %v1978, 0
        %v2013 = vsel %vm1270, %v1979, 0
        %2015 = vmatprep.subr.mxu0 0.0
        %2016 = vmatpush1.msra.mxu0 0.0
        %2017 = vmatprep.subr.mxu0 0.0
        %2018 = vmatpush1.msra.mxu0 0.0
        %2019 = vmatprep.subr.mxu0 0.0
        %2020 = vmatpush1.msra.mxu0 0.0
        %2021 = vmatprep.subr.mxu0 0.0
        %2022 = vmatpush1.msra.mxu0 0.0
        %2023 = vmatprep.subr.mxu0 0.0
        %2024 = vmatpush1.msra.mxu0 0.0
        %2025 = vmatprep.subr.mxu0 0.0
        %2026 = vmatpush1.msra.mxu0 0.0
        %2027 = vmatprep.subr.mxu0 0.0
        %2028 = vmatpush1.msra.mxu0 0.0
        %2029 = vmatprep.subr.mxu0 0.0
        %2030 = vmatpush1.msra.mxu0 0.0
        %2031 = vmatprep.subr.mxu0 0.0
        %2032 = vmatpush1.msra.mxu0 0.0
        %2033 = vmatprep.subr.mxu0 0.0
        %2034 = vmatpush1.msra.mxu0 0.0
        %2035 = vmatprep.subr.mxu0 0.0
        %2036 = vmatpush1.msra.mxu0 0.0
        %2037 = vmatprep.subr.mxu0 0.0
        %2038 = vmatpush1.msra.mxu0 0.0
        %2039 = vmatprep.subr.mxu0 0.0
        %2040 = vmatpush1.msra.mxu0 %v1974
        %2041 = vmatprep.subr.mxu0 0.0
        %2042 = vmatpush1.msra.mxu0 %v1973
        %2043 = vmatprep.subr.mxu0 0.0
        %2044 = vmatpush1.msra.mxu0 %v1972
        %2045 = vmatprep.subr.mxu0 0.0
        %2046 = vmatpush1.msra.mxu0 %v1971
        %2047 = vmatprep.subr.mxu0 0.0
        %2048 = vmatpush2.msra.mxu0 0.0
        %2049 = vmatprep.subr.mxu0 0.0
        %2050 = vmatpush2.msra.mxu0 0.0
        %2051 = vmatprep.subr.mxu0 0.0
        %2052 = vmatpush2.msra.mxu0 0.0
        %2053 = vmatprep.subr.mxu0 0.0
        %2054 = vmatpush2.msra.mxu0 0.0
        %2055 = vmatprep.subr.mxu0 0.0
        %2056 = vmatpush2.msra.mxu0 0.0
        %2057 = vmatprep.subr.mxu0 0.0
        %2058 = vmatpush2.msra.mxu0 0.0
        %2059 = vmatprep.subr.mxu0 0.0
        %2060 = vmatpush2.msra.mxu0 0.0
        %2061 = vmatprep.subr.mxu0 0.0
        %2062 = vmatpush2.msra.mxu0 0.0
        %2063 = vmatprep.subr.mxu0 0.0
        %2064 = vmatpush2.msra.mxu0 0.0
        %2065 = vmatprep.subr.mxu0 0.0
        %2066 = vmatpush2.msra.mxu0 0.0
        %2067 = vmatprep.subr.mxu0 0.0
        %2068 = vmatpush2.msra.mxu0 0.0
        %2069 = vmatprep.subr.mxu0 0.0
        %2070 = vmatpush2.msra.mxu0 0.0
        %2071 = vmatprep.subr.mxu0 0.0
        %2072 = vmatpush2.msra.mxu0 0.0
        %2073 = vmatprep.subr.mxu0 0.0
        %2074 = vmatpush2.msra.mxu0 0.0
        %2075 = vmatprep.subr.mxu0 0.0
        %2076 = vmatpush2.msra.mxu0 0.0
        %2077 = vmatprep.subr.mxu0 0.0
        %2078 = vmatpush2.msra.mxu0 0.0
        %2079 = vmatprep.mubr.f32.mxu0 0.0
        %2080 = vmatmul.mubr.f32.gmra.mxu0 %v2004
        %v2081 = vpop.f32.mrf.mxu0
        %v2082 = vpop.f32.mrf.mxu0
        %2083 = vmatprep.mubr.f32.mxu0 0.0
        %2084 = vmatmul.mubr.f32.gmra.mxu0 %v2007
        %v2085 = vpop.f32.mrf.mxu0
        %v2086 = vpop.f32.mrf.mxu0
        %2087 = vmatprep.mubr.f32.mxu0 0.0
        %2088 = vmatmul.mubr.f32.gmra.mxu0 %v2010
        %v2089 = vpop.f32.mrf.mxu0
        %v2090 = vadd.f32 %v1996, %v2089
        %v2091 = vpop.f32.mrf.mxu0
        %2092 = vmatprep.mubr.f32.mxu0 0.0
        %2093 = vmatmul.mubr.f32.gmra.mxu0 %v2013
        %v2094 = vpop.f32.mrf.mxu0
        %v2095 = vadd.f32 %v2001, %v2094
        %v2096 = vpop.f32.mrf.mxu0
        %2097 = vdwg.mxu0
        %v2098 = vadd.f32 %v1739, %v2090
        %v2099 = vadd.f32 %v1740, %v2095
        %v2100 = vmax.f32 %v2098, 0.0
        %v2101 = vmax.f32 %v2099, 0.0
        %v2102 = vld [vmem:[%s765] sm:$0xff]
        %v2103 = vld [vmem:[%s765 + $0x8] sm:$0xff]
        %v2104 = vld [vmem:[%s774] sm:$0xff]
        %v2105 = vld [vmem:[%s774 + $0x8] sm:$0xff]
        %2107 = vset.pattern.permute.xlu0 0
        %2108 = vperm.xlu0 %2107, %v2104
        %v2109 = vpop.permute.xlu0 %2108
        %2112 = vset.pattern.permute.xlu0 0
        %2113 = vperm.xlu0 %2112, %v2105
        %v2114 = vpop.permute.xlu0 %2113
        %vm2116 = vcmask 130048
        %v2118 = vsel %vm2116, %v2102, 0
        %v2121 = vsel %vm2116, %v2103, 0
        %2123 = vmatprep.subr.mxu0 0.0
        %2124 = vmatpush1.msra.mxu0 0.0
        %2125 = vmatprep.subr.mxu0 0.0
        %2126 = vmatpush1.msra.mxu0 0.0
        %2127 = vmatprep.subr.mxu0 0.0
        %2128 = vmatpush1.msra.mxu0 0.0
        %2129 = vmatprep.subr.mxu0 0.0
        %2130 = vmatpush1.msra.mxu0 0.0
        %2131 = vmatprep.subr.mxu0 0.0
        %2132 = vmatpush1.msra.mxu0 0.0
        %2133 = vmatprep.subr.mxu0 0.0
        %2134 = vmatpush1.msra.mxu0 0.0
        %2135 = vmatprep.subr.mxu0 0.0
        %2136 = vmatpush1.msra.mxu0 0.0
        %2137 = vmatprep.subr.mxu0 0.0
        %2138 = vmatpush1.msra.mxu0 0.0
        %2139 = vmatprep.subr.mxu0 0.0
        %2140 = vmatpush1.msra.mxu0 0.0
        %2141 = vmatprep.subr.mxu0 0.0
        %2142 = vmatpush1.msra.mxu0 0.0
        %2143 = vmatprep.subr.mxu0 0.0
        %2144 = vmatpush1.msra.mxu0 0.0
        %2145 = vmatprep.subr.mxu0 0.0
        %2146 = vmatpush1.msra.mxu0 0.0
        %2147 = vmatprep.subr.mxu0 0.0
        %2148 = vmatpush1.msra.mxu0 0.0
        %2149 = vmatprep.subr.mxu0 0.0
        %2150 = vmatpush1.msra.mxu0 0.0
        %2151 = vmatprep.subr.mxu0 0.0
        %2152 = vmatpush1.msra.mxu0 %v2101
        %2153 = vmatprep.subr.mxu0 0.0
        %2154 = vmatpush1.msra.mxu0 %v2100
        %2155 = vmatprep.subr.mxu0 0.0
        %2156 = vmatpush2.msra.mxu0 0.0
        %2157 = vmatprep.subr.mxu0 0.0
        %2158 = vmatpush2.msra.mxu0 0.0
        %2159 = vmatprep.subr.mxu0 0.0
        %2160 = vmatpush2.msra.mxu0 0.0
        %2161 = vmatprep.subr.mxu0 0.0
        %2162 = vmatpush2.msra.mxu0 0.0
        %2163 = vmatprep.subr.mxu0 0.0
        %2164 = vmatpush2.msra.mxu0 0.0
        %2165 = vmatprep.subr.mxu0 0.0
        %2166 = vmatpush2.msra.mxu0 0.0
        %2167 = vmatprep.subr.mxu0 0.0
        %2168 = vmatpush2.msra.mxu0 0.0
        %2169 = vmatprep.subr.mxu0 0.0
        %2170 = vmatpush2.msra.mxu0 0.0
        %2171 = vmatprep.subr.mxu0 0.0
        %2172 = vmatpush2.msra.mxu0 0.0
        %2173 = vmatprep.subr.mxu0 0.0
        %2174 = vmatpush2.msra.mxu0 0.0
        %2175 = vmatprep.subr.mxu0 0.0
        %2176 = vmatpush2.msra.mxu0 0.0
        %2177 = vmatprep.subr.mxu0 0.0
        %2178 = vmatpush2.msra.mxu0 0.0
        %2179 = vmatprep.subr.mxu0 0.0
        %2180 = vmatpush2.msra.mxu0 0.0
        %2181 = vmatprep.subr.mxu0 0.0
        %2182 = vmatpush2.msra.mxu0 0.0
        %2183 = vmatprep.subr.mxu0 0.0
        %2184 = vmatpush2.msra.mxu0 0.0
        %2185 = vmatprep.subr.mxu0 0.0
        %2186 = vmatpush2.msra.mxu0 0.0
        %2187 = vmatprep.mubr.f32.mxu0 0.0
        %2188 = vmatmul.mubr.f32.gmra.mxu0 %v2118
        %v2189 = vpop.f32.mrf.mxu0
        %v2190 = vadd.f32 %v2109, %v2189
        %v2191 = vpop.f32.mrf.mxu0
        %2192 = vmatprep.mubr.f32.mxu0 0.0
        %2193 = vmatmul.mubr.f32.gmra.mxu0 %v2121
        %v2194 = vpop.f32.mrf.mxu0
        %v2195 = vadd.f32 %v2114, %v2194
        %v2196 = vpop.f32.mrf.mxu0
        %2197 = vdwg.mxu0
        %v2198 = vmax.f32 %v2190, 0.0
        %v2199 = vmax.f32 %v2195, 0.0
        %v2200 = vld [vmem:[%s881] sm:$0x3]
        %v2201 = vld [vmem:[%s885] sm:$0x3]
        %2203 = vset.pattern.permute.xlu0 0
        %2204 = vperm.xlu0 %2203, %v2201
        %v2205 = vpop.permute.xlu0 %2204
        %v2208 = vsel %vm2116, %v2200, 0
        %2210 = vmatprep.subr.mxu0 0.0
        %2211 = vmatpush1.msra.mxu0 0.0
        %2212 = vmatprep.subr.mxu0 0.0
        %2213 = vmatpush1.msra.mxu0 0.0
        %2214 = vmatprep.subr.mxu0 0.0
        %2215 = vmatpush1.msra.mxu0 0.0
        %2216 = vmatprep.subr.mxu0 0.0
        %2217 = vmatpush1.msra.mxu0 0.0
        %2218 = vmatprep.subr.mxu0 0.0
        %2219 = vmatpush1.msra.mxu0 0.0
        %2220 = vmatprep.subr.mxu0 0.0
        %2221 = vmatpush1.msra.mxu0 0.0
        %2222 = vmatprep.subr.mxu0 0.0
        %2223 = vmatpush1.msra.mxu0 0.0
        %2224 = vmatprep.subr.mxu0 0.0
        %2225 = vmatpush1.msra.mxu0 0.0
        %2226 = vmatprep.subr.mxu0 0.0
        %2227 = vmatpush1.msra.mxu0 0.0
        %2228 = vmatprep.subr.mxu0 0.0
        %2229 = vmatpush1.msra.mxu0 0.0
        %2230 = vmatprep.subr.mxu0 0.0
        %2231 = vmatpush1.msra.mxu0 0.0
        %2232 = vmatprep.subr.mxu0 0.0
        %2233 = vmatpush1.msra.mxu0 0.0
        %2234 = vmatprep.subr.mxu0 0.0
        %2235 = vmatpush1.msra.mxu0 0.0
        %2236 = vmatprep.subr.mxu0 0.0
        %2237 = vmatpush1.msra.mxu0 0.0
        %2238 = vmatprep.subr.mxu0 0.0
        %2239 = vmatpush1.msra.mxu0 %v2199
        %2240 = vmatprep.subr.mxu0 0.0
        %2241 = vmatpush1.msra.mxu0 %v2198
        %2242 = vmatprep.subr.mxu0 0.0
        %2243 = vmatpush2.msra.mxu0 0.0
        %2244 = vmatprep.subr.mxu0 0.0
        %2245 = vmatpush2.msra.mxu0 0.0
        %2246 = vmatprep.subr.mxu0 0.0
        %2247 = vmatpush2.msra.mxu0 0.0
        %2248 = vmatprep.subr.mxu0 0.0
        %2249 = vmatpush2.msra.mxu0 0.0
        %2250 = vmatprep.subr.mxu0 0.0
        %2251 = vmatpush2.msra.mxu0 0.0
        %2252 = vmatprep.subr.mxu0 0.0
        %2253 = vmatpush2.msra.mxu0 0.0
        %2254 = vmatprep.subr.mxu0 0.0
        %2255 = vmatpush2.msra.mxu0 0.0
        %2256 = vmatprep.subr.mxu0 0.0
        %2257 = vmatpush2.msra.mxu0 0.0
        %2258 = vmatprep.subr.mxu0 0.0
        %2259 = vmatpush2.msra.mxu0 0.0
        %2260 = vmatprep.subr.mxu0 0.0
        %2261 = vmatpush2.msra.mxu0 0.0
        %2262 = vmatprep.subr.mxu0 0.0
        %2263 = vmatpush2.msra.mxu0 0.0
        %2264 = vmatprep.subr.mxu0 0.0
        %2265 = vmatpush2.msra.mxu0 0.0
        %2266 = vmatprep.subr.mxu0 0.0
        %2267 = vmatpush2.msra.mxu0 0.0
        %2268 = vmatprep.subr.mxu0 0.0
        %2269 = vmatpush2.msra.mxu0 0.0
        %2270 = vmatprep.subr.mxu0 0.0
        %2271 = vmatpush2.msra.mxu0 0.0
        %2272 = vmatprep.subr.mxu0 0.0
        %2273 = vmatpush2.msra.mxu0 0.0
        %2274 = vmatprep.mubr.f32.mxu0 0.0
        %2275 = vmatmul.mubr.f32.gmra.mxu0 %v2208
        %v2276 = vpop.f32.mrf.mxu0
        %v2277 = vadd.f32 %v2205, %v2276
        %v2278 = vpop.f32.mrf.mxu0
        %2279 = vdwg.mxu0
        %v2280 = vmul.f32 %v2277, 1.442695
        %v2281 = vpow.pop %v2280
        %v2282 = vld [vmem:[#allocation3] sm:$0x1]
        %v2285 = vunpack.c.l.s4 1966171168
        %v2286 = vunpack.c.0.s8 %v2285
        %v2287 = vlaneseq
        %v2288 = vshrl.u32 %v2287, 7
        %v2289 = vsub.s32 %v2286, %v2288
        %v2290 = vrot.slane %v2281, %v2289
        %v2291 = vcombine.high %v2290, %v2290
        %v2293 = vunpack.c.l.s4 1966171168
        %v2294 = vunpack.c.0.s8 %v2293
        %v2295 = vlaneseq
        %v2296 = vshrl.u32 %v2295, 7
        %v2297 = vsub.s32 %v2294, %v2296
        %v2298 = vrot.slane %v2291, %v2297
        %v2300 = vmul.f32 %v2282, %v2298
        %v2301 = vadd.f32 %v2300, %v2277
        %2302 = vst [vmem:[#allocation3] sm:$0x1] %v2301
        %v2303 = vld [vmem:[#allocation4] sm:$0x1]
        %v2306 = vunpack.c.l.s4 1966171168
        %v2307 = vunpack.c.0.s8 %v2306
        %v2308 = vlaneseq
        %v2309 = vshrl.u32 %v2308, 7
        %v2310 = vsub.s32 %v2307, %v2309
        %v2311 = vrot.slane %v2277, %v2310
        %v2312 = vcombine.high %v2311, %v2311
        %v2314 = vunpack.c.l.s4 1966171168
        %v2315 = vunpack.c.0.s8 %v2314
        %v2316 = vlaneseq
        %v2317 = vshrl.u32 %v2316, 7
        %v2318 = vsub.s32 %v2315, %v2317
        %v2319 = vrot.slane %v2312, %v2318
        %v2321 = vadd.f32 %v2303, %v2319
        %2322 = vst [vmem:[#allocation4] sm:$0x1] %v2321
        %v2323 = vrot.slane %v2281, 1
        %2325 = vrot.lane.b32.xlu0 %v2323, 1
        %v2326 = vpop.permute.xlu0 %2325
        %v2327 = vsel %vm950, %v2326, 0.0
        %v2328 = vmul.f32 %v894, %v2327
        %2329 = vrot.lane.b32.xlu0 %v2277, 1
        %v2330 = vpop.permute.xlu0 %2329
        %v2331 = vsel %vm950, %v2330, 0.0
        %v2332 = vadd.f32 %v2328, %v2331
        %2333 = vst [vmem:[#allocation2] sm:$0x1] %v2332
        %p2334 = scmp.eq.s32.totalorder %s55, 1
        // Predicated region
        $region113: #{_lambda_.1} parent=67 // pred_check
          %p2335 = pneg %p2334
        $region114: #{_lambda_.1} parent=67 // pred_check_branch
          %2337 = sbr.rel (%p2335) target = $region116
        $region115: #{_lambda_.1} parent=67 // pred_region
          %v2338 = vld [vmem:[#allocation2] sm:$0x1]
          %2339 = vst [vmem:[%s865] sm:$0x1] %v2338
          %v2340 = vld [vmem:[#allocation3] sm:$0x1]
          %2341 = vst [vmem:[%s871] sm:$0x1] %v2340
          %v2342 = vld [vmem:[#allocation4] sm:$0x1]
          %2343 = vst [vmem:[%s877] sm:$0x1] %v2342
        $region116: #{_lambda_.1} parent=67 // pred_fallthru
          _
        %s2344 = sand.u32 %s382, 1
        %s2345 = scalar_lea.sflag [#allocation7], %s2344
        %s2346 = sand.u32 %s382, 1
        %s2347 = scalar_lea.vmem [#allocation22], %s2346
        %s2348 = sand.u32 %s50, 1
        %s2349 = scalar_lea.sflag [#allocation24], %s2348
        %s2350 = sand.u32 %s408, 1
        %s2351 = scalar_lea.vmem [#allocation23], %s2350
        %s2352 = sand.u32 %s50, 1
        %s2353 = scalar_lea.sflag [#allocation24], %s2352
        %s2354 = sand.u32 %s434, 1
        %s2355 = scalar_lea.vmem [#allocation25], %s2354
        // Predicated region
        $region117: #{_lambda_.1} parent=67 // pred_check
          %p2356 = pneg %p392
        $region118: #{_lambda_.1} parent=67 // pred_check_branch
          %2358 = sbr.rel (%p2356) target = $region120
        $region119: #{_lambda_.1} parent=67 // pred_region
          %s2360 = ssub.s32 16, 16
          %2361 = vsyncadd %s2345, %s2360
          %s2362 = smul.addr %s54, 16
          %s2363 = scalar_lea.hbm %s12, %s2362
          %s2365 = sshll.u32 %s2347, 4
          %s2366 = int_to_ptr.vmem [resolvable:$true] %s2365
          %2368 = dma.vmem_to_hbm [thread:$0]  %s2366, 16, %s2363, %s2345
        $region120: #{_lambda_.1} parent=67 // pred_fallthru
          _
        // Predicated region
        $region121: #{_lambda_.1} parent=67 // pred_check
          %p2369 = pneg %p418
        $region122: #{_lambda_.1} parent=67 // pred_check_branch
          %2371 = sbr.rel (%p2369) target = $region124
        $region123: #{_lambda_.1} parent=67 // pred_region
          %s2373 = ssub.s32 16, 16
          %2374 = vsyncadd %s2349, %s2373
          %s2375 = smul.addr %s54, 16
          %s2376 = scalar_lea.hbm %s13, %s2375
          %s2378 = sshll.u32 %s2351, 4
          %s2379 = int_to_ptr.vmem [resolvable:$true] %s2378
          %2381 = dma.vmem_to_hbm [thread:$0]  %s2379, 16, %s2376, %s2349
        $region124: #{_lambda_.1} parent=67 // pred_fallthru
          _
        // Predicated region
        $region125: #{_lambda_.1} parent=67 // pred_check
          %p2382 = pneg %p444
        $region126: #{_lambda_.1} parent=67 // pred_check_branch
          %2384 = sbr.rel (%p2382) target = $region128
        $region127: #{_lambda_.1} parent=67 // pred_region
          %s2386 = ssub.s32 16, 16
          %2387 = vsyncadd %s2353, %s2386
          %s2388 = smul.addr %s54, 16
          %s2389 = scalar_lea.hbm %s14, %s2388
          %s2391 = sshll.u32 %s2355, 4
          %s2392 = int_to_ptr.vmem [resolvable:$true] %s2391
          %2394 = dma.vmem_to_hbm [thread:$0]  %s2392, 16, %s2389, %s2353
        $region128: #{_lambda_.1} parent=67 // pred_fallthru
          _
      $region68: #{_lambda_.1} parent=5 // pred_fallthru
        _
      %p2395 = scmp.le.s32.totalorder 2, %s45
      // Predicated region
      $region129: #{_lambda_.1} parent=5 // pred_check
        %p2396 = pneg %p2395
      $region130: #{_lambda_.1} parent=5 // pred_check_branch
        %2398 = sbr.rel (%p2396) target = $region132
      $region131: #{_lambda_.1} parent=5 // pred_region
        %s2399 = ssub.s32 %s45, 2
        // Predicated region
        $region133: #{_lambda_.1} parent=131 // pred_check
          %p2400 = pneg %p398
        $region134: #{_lambda_.1} parent=131 // pred_check_branch
          %2402 = sbr.rel (%p2400) target = $region136
        $region135: #{_lambda_.1} parent=131 // pred_region
          %s2403 = sand.u32 %s383, 1
          %s2404 = scalar_lea.sflag [#allocation7], %s2403
          %s2405 = sand.u32 %s383, 1
          %s2406 = scalar_lea.vmem [#allocation22], %s2405
          %2407 = dma.done %s2404, 16
        $region136: #{_lambda_.1} parent=131 // pred_fallthru
          _
        // Predicated region
        $region137: #{_lambda_.1} parent=131 // pred_check
          %p2408 = pneg %p424
        $region138: #{_lambda_.1} parent=131 // pred_check_branch
          %2410 = sbr.rel (%p2408) target = $region140
        $region139: #{_lambda_.1} parent=131 // pred_region
          %s2411 = sand.u32 %s51, 1
          %s2412 = scalar_lea.sflag [#allocation24], %s2411
          %s2413 = sand.u32 %s409, 1
          %s2414 = scalar_lea.vmem [#allocation23], %s2413
          %2415 = dma.done %s2412, 16
        $region140: #{_lambda_.1} parent=131 // pred_fallthru
          _
        // Predicated region
        $region141: #{_lambda_.1} parent=131 // pred_check
          %p2416 = pneg %p450
        $region142: #{_lambda_.1} parent=131 // pred_check_branch
          %2418 = sbr.rel (%p2416) target = $region144
        $region143: #{_lambda_.1} parent=131 // pred_region
          %s2419 = sand.u32 %s51, 1
          %s2420 = scalar_lea.sflag [#allocation24], %s2419
          %s2421 = sand.u32 %s435, 1
          %s2422 = scalar_lea.vmem [#allocation25], %s2421
          %2423 = dma.done %s2420, 16
        $region144: #{_lambda_.1} parent=131 // pred_fallthru
          _
      $region132: #{_lambda_.1} parent=5 // pred_fallthru
        _
    $region6: #{_lambda_.1} parent=1 // loop_footer
      %s49 = sadd.s32 1, %s45
    $region7: #{_lambda_.1} parent=1 // loop_footer_branch
      %44 = sbr.rel target = $region3
    $region8: #{_lambda_.1} parent=1 // loop_exit
      _
    %2424 = vsyncpa [#allocation6], 1
    %s2425 = scalar_lea.sflag [#allocation6], 1
    %2426 = vsyncpa %s2425, 1
    %2427 = vsyncpa [#allocation9], 1
    %s2428 = scalar_lea.sflag [#allocation9], 1
    %2429 = vsyncpa %s2428, 1
    %2430 = vsyncpa [#allocation12], 1
    %s2431 = scalar_lea.sflag [#allocation12], 1
    %2432 = vsyncpa %s2431, 1
    %2433 = vsyncpa [#allocation15], 1
    %s2434 = scalar_lea.sflag [#allocation15], 1
    %2435 = vsyncpa %s2434, 1
    %2436 = vsyncpa [#allocation18], 1
    %s2437 = scalar_lea.sflag [#allocation18], 1
    %2438 = vsyncpa %s2437, 1
    %2439 = vsyncpa [#allocation21], 1
    %s2440 = scalar_lea.sflag [#allocation21], 1
    %2441 = vsyncpa %s2440, 1
    %2442 = vsyncpa [#allocation7], 1
    %s2443 = scalar_lea.sflag [#allocation7], 1
    %2444 = vsyncpa %s2443, 1
    %2445 = vsyncpa [#allocation24], 1
    %s2446 = scalar_lea.sflag [#allocation24], 1
    %2447 = vsyncpa %s2446, 1

</llo_original>
